<compile_context>
chip_gen: v5e
topology: v5e:2x2
jax: 0.10.0
libtpu: 0.0.40
codegen_flags: <defaults>
</compile_context>

<pallas_src>
import functools

import jax
import jax.numpy as jnp
from jax import lax
from jax.experimental import pallas as pl
from jax.experimental.pallas import tpu as pltpu


def _round_up(x, m):
    return ((x + m - 1) // m) * m


# Bias row order inside the slab's bias block.
_B_GCN1, _B_GCN2, _B_GCN3, _B_B0, _B_B1, _B_FB1, _B_FB2 = range(7)


def _slab_layout(W, crp):
    """Row offsets of each weight block inside the packed (rows, W) weight slab."""
    off, r = {}, 0
    for name in ("gw1", "gw2", "gw3", "wie", "whh0", "wih1", "whh1", "fw1", "fw2"):
        off[name] = r
        r += W
    off["wgm"] = r;  r += crp          # layer-0 input weight (ground-motion rows)
    off["msel"] = r; r += crp          # mask-lane selector (broadcasts mask to all lanes)
    off["bias"] = r; r += 8            # 7 bias rows + 1 zero row (sublane-aligned block)
    off["rows"] = r
    return off


# ----------------------------------------------------------------------------
# Fully fused forward kernel.
# ----------------------------------------------------------------------------
def _gcn_lstm_kernel(adj_ref, x_ref, pool_ref, gm_ref, w_ref, out_ref,
                     hseq_s, pre_s, *, n_steps, bpad, hid, layout):
    f32 = jnp.float32
    W = w_ref.shape[1]              # = 4 * hid, lane-dense width (128 here)
    crp = gm_ref.shape[1]
    L = layout

    def wblk(name, rows=None):      # tile-aligned static slice of the packed weight slab
        r = L[name]
        return w_ref[r:r + (W if rows is None else rows), :]

    def brow(k):                    # one (1, W) bias row out of the bias block
        r = L["bias"] + k
        return w_ref[r:r + 1, :]

    # ---------------- GCN encoder + global mean pool (prologue, off the chain) --------
    adj = adj_ref[...]

    def gconv(h, wname, bidx, relu):
        y = jnp.dot(jnp.dot(adj, h, preferred_element_type=f32), wblk(wname),
                    preferred_element_type=f32) + brow(bidx)
        return jnp.maximum(y, 0.0) if relu else y

    h = gconv(x_ref[...], "gw1", _B_GCN1, True)
    h = gconv(h, "gw2", _B_GCN2, True)
    h = gconv(h, "gw3", _B_GCN3, False)            # dropout: eval-mode identity
    emb = jnp.dot(pool_ref[...], h, preferred_element_type=f32)            # (bpad, W)

    # Time-invariant part of the layer-0 gates: graph embedding + combined bias.
    emb_gates = jnp.dot(emb, wblk("wie"), preferred_element_type=f32) + brow(_B_B0)

    # Hoisted layer-0 input projection for ALL steps in one matmul (mask lane hits the
    # zero-padded rows of "wgm" and contributes nothing).
    pre = jnp.dot(gm_ref[...], wblk("wgm", crp), preferred_element_type=f32)
    for t in range(n_steps):
        pre_s[t * bpad:(t + 1) * bpad, :] = pre[t * bpad:(t + 1) * bpad, :] + emb_gates

    # ---------------- 2-layer LSTM, unrolled time loop --------------------------------
    lane = lax.broadcasted_iota(jnp.int32, (bpad, W), 1)
    g_sel = (lane >= 2 * hid) & (lane < 3 * hid)   # lanes holding the "g" gate

    whh0 = wblk("whh0")
    wih1 = wblk("wih1")
    whh1 = wblk("whh1")
    b1 = brow(_B_B1)

    def cell(gates, c_old):
        # PyTorch gate order [i, f, g, o] packed in one (bpad, 4H) row.
        # Single full-width EUP pass: tanh(x) = 2*sigmoid(2x) - 1 on the g lanes; the
        # two extra mul/sub ops ride in the free VALU slots.
        s = jax.nn.sigmoid(jnp.where(g_sel, gates + gates, gates))
        act = jnp.where(g_sel, s + s - 1.0, s)
        f_al = pltpu.roll(act, 3 * hid, 1)          # f -> lanes [0, hid)   (XLU slot)
        g_al = pltpu.roll(act, 2 * hid, 1)          # g -> lanes [0, hid)
        o_al = pltpu.roll(act, hid, 1)              # o -> lanes [0, hid)
        # Lanes >= hid carry bounded junk (|c| <= n_steps); it is absorbed by the
        # zero-padded rows of whh*/wih1/fc_w1 downstream, so no lane-select is needed
        # on the serial per-step chain.
        c_new = f_al * c_old + act * g_al
        h_new = o_al * jnp.tanh(c_new)
        return h_new, c_new

    zeros = jnp.zeros((bpad, W), f32)
    h0, c0, h1, c1 = zeros, zeros, zeros, zeros
    # n_steps is small & static -> full unroll (max LLO visibility).
    # TODO(synk): switch to lax.fori_loop(..., unroll=2..4) + pl.multiple_of on the store
    # offset once n_steps grows beyond ~16, to bound vreg live ranges.
    for t in range(n_steps):
        gates0 = pre_s[t * bpad:(t + 1) * bpad, :] + jnp.dot(
            h0, whh0, preferred_element_type=f32)
        h0, c0 = cell(gates0, c0)
        # nn.LSTM inter-layer dropout is a training-only op; eval path only.
        gates1 = (jnp.dot(h0, wih1, preferred_element_type=f32)
                  + jnp.dot(h1, whh1, preferred_element_type=f32) + b1)
        h1, c1 = cell(gates1, c1)
        hseq_s[t * bpad:(t + 1) * bpad, :] = h1     # sublane-aligned, lane-dense store

    # ---------------- packed-sequence mask + fc_out head ------------------------------
    # The mask rides in gm lane `cr`; a tiny selector matmul broadcasts it to all W lanes
    # (no separate mask DMA, no sub-lane slicing).
    mask_full = jnp.dot(gm_ref[...], wblk("msel", crp), preferred_element_type=f32)
    hm = hseq_s[...] * mask_full
    y = jnp.maximum(jnp.dot(hm, wblk("fw1"), preferred_element_type=f32)
                    + brow(_B_FB1), 0.0)
    # fc_w2 / fc_b2 are zero-padded to W columns -> single lane-dense output store.
    out_ref[...] = jnp.dot(y, wblk("fw2"), preferred_element_type=f32) + brow(_B_FB2)


def _full_spec(a):
    return pl.BlockSpec(a.shape, lambda i, nd=a.ndim: (0,) * nd)


# ----------------------------------------------------------------------------
# Static, per-structure / per-checkpoint glue (hoisted out of the per-call forward).
# ----------------------------------------------------------------------------
def build_graph_glue(edge_index, batch, n_nodes, num_graphs, bpad, npad):
    """Dense GCN-normalized adjacency (gcn_norm w/ self-loops) + padded mean-pool matrix."""
    src_idx, dst_idx = edge_index[0], edge_index[1]
    a = jnp.zeros((n_nodes, n_nodes), jnp.float32).at[dst_idx, src_idx].add(1.0)
    a_hat = a + jnp.eye(n_nodes, dtype=jnp.float32)
    dinv = lax.rsqrt(a_hat.sum(axis=1))
    adj = dinv[:, None] * a_hat * dinv[None, :]
    adj = jnp.pad(adj, ((0, npad - n_nodes), (0, npad - n_nodes)))

    one_hot = (batch[None, :] == jnp.arange(num_graphs)[:, None]).astype(jnp.float32)
    pool = one_hot / one_hot.sum(axis=1, keepdims=True)
    pool = jnp.pad(pool, ((0, bpad - num_graphs), (0, npad - n_nodes)))
    return adj, pool


def prepare_params(params, compression_rate):
    """Pack every weight/bias into ONE lane-dense (rows, 4*hid) f32 slab (single DMA)."""
    hid = params["whh0"].shape[0]
    W = 4 * hid
    assert W % 128 == 0, "4*hidden must be a multiple of 128 lanes"
    cr = compression_rate
    crp = _round_up(cr + 1, 8)                     # ground-motion lanes + 1 mask lane
    L = _slab_layout(W, crp)

    for k in ("gcn_w1", "gcn_w2", "gcn_w3", "fc_w1", "fc_w2"):
        assert max(params[k].shape) <= W, k

    slab = jnp.zeros((L["rows"], W), jnp.float32)

    def put(s, name, w):
        r = L[name]
        return s.at[r:r + w.shape[0], :w.shape[1]].set(w.astype(jnp.float32))

    slab = put(slab, "gw1", params["gcn_w1"])
    slab = put(slab, "gw2", params["gcn_w2"])
    slab = put(slab, "gw3", params["gcn_w3"])
    slab = put(slab, "wie", params["wih0"][cr:])   # embedding rows of layer-0 input W
    slab = put(slab, "whh0", params["whh0"])
    slab = put(slab, "wih1", params["wih1"])
    slab = put(slab, "whh1", params["whh1"])
    slab = put(slab, "fw1", params["fc_w1"])
    slab = put(slab, "fw2", params["fc_w2"])
    slab = put(slab, "wgm", params["wih0"][:cr])   # ground-motion rows (mask row stays 0)
    slab = slab.at[L["msel"] + cr, :].set(1.0)     # selector row for the mask lane
    for k, b in zip((_B_GCN1, _B_GCN2, _B_GCN3, _B_B0, _B_B1, _B_FB1, _B_FB2),
                    (params["gcn_b1"], params["gcn_b2"], params["gcn_b3"],
                     params["b0"], params["b1"], params["fc_b1"], params["fc_b2"])):
        slab = slab.at[L["bias"] + k:L["bias"] + k + 1, :b.shape[1]].set(
            b.astype(jnp.float32))
    return slab


# ----------------------------------------------------------------------------
# Full GCN_LSTM forward (one pallas_call).
# ----------------------------------------------------------------------------
def gcn_lstm_forward(wslab, x_pad, adj, pool_pad, ground_motion, seq_length_list,
                     *, num_graphs, compression_rate, max_story, hid):
    f32 = jnp.float32
    b = num_graphs
    bpad = pool_pad.shape[0]
    src_len = ground_motion.shape[-1]
    trg_len = src_len // 10
    cr = compression_rate
    lc = src_len // cr
    W = wslab.shape[1]
    crp = _round_up(cr + 1, 8)
    layout = _slab_layout(W, crp)
    out_dim = max_story * (cr // 10)

    # (B, src_len) -> time-major (lc*bpad, crp); lane `cr` carries the packed-seq mask
    # (pad_packed_sequence zero-fills beyond each length; lengths are truncated to int).
    gm = ground_motion.reshape(b, lc, cr).astype(f32)
    gm = jnp.pad(gm, ((0, bpad - b), (0, 0), (0, 0)))
    comp_len = jnp.floor(seq_length_list.astype(f32) / cr)
    comp_len = jnp.pad(comp_len, (0, bpad - b))
    mask_bt = (jnp.arange(lc, dtype=f32)[None, :] < comp_len[:, None]).astype(f32)
    extra = jnp.zeros((bpad, lc, crp - cr), f32).at[:, :, 0].set(mask_bt)
    gmx = jnp.transpose(jnp.concatenate([gm, extra], axis=2),
                        (1, 0, 2)).reshape(lc * bpad, crp)

    kernel = functools.partial(_gcn_lstm_kernel, n_steps=lc, bpad=bpad, hid=hid,
                               layout=layout)
    args = (adj, x_pad, pool_pad, gmx, wslab)

    # NOTE: at production sizes, add a leading "parallel" grid axis over batch tiles of 8
    # (uses v7x's 2nd TensorCore) and tile time onto an "arbitrary" axis carrying
    # (h0,c0,h1,c1) in scratch to bound VMEM on v7x (64 MiB). At B=2, lc=8 one fused
    # invocation is optimal.
    out = pl.pallas_call(
        kernel,
        out_shape=jax.ShapeDtypeStruct((lc * bpad, W), f32),
        grid=(1,),
        in_specs=[_full_spec(a) for a in args],
        out_specs=pl.BlockSpec((lc * bpad, W), lambda i: (0, 0)),
        scratch_shapes=[pltpu.VMEM((lc * bpad, W), f32),     # LSTM output sequence
                        pltpu.VMEM((lc * bpad, W), f32)],    # hoisted layer-0 input gates
        compiler_params=pltpu.CompilerParams(dimension_semantics=("arbitrary",)),
    )(*args)

    out = out.reshape(lc, bpad, W)
    out = jnp.transpose(out, (1, 0, 2))[:b, :, :out_dim]     # (B, lc, out_dim)
    return out.reshape(b, trg_len, max_story)


# ----------------------------------------------------------------------------
# Pure-JAX reference (mirrors the PyTorch module in eval mode) for validation.
# ----------------------------------------------------------------------------
def reference_forward(params, x, edge_index, batch, ground_motion, seq_length_list,
                      *, num_graphs, compression_rate, max_story):
    f32 = jnp.float32
    n_nodes = x.shape[0]
    a = jnp.zeros((n_nodes, n_nodes), f32).at[edge_index[1], edge_index[0]].add(1.0)
    a_hat = a + jnp.eye(n_nodes, dtype=f32)
    dinv = 1.0 / jnp.sqrt(a_hat.sum(axis=1))
    adj = dinv[:, None] * a_hat * dinv[None, :]
    hp = jax.nn.relu(adj @ x @ params["gcn_w1"] + params["gcn_b1"])
    hp = jax.nn.relu(adj @ hp @ params["gcn_w2"] + params["gcn_b2"])
    hp = adj @ hp @ params["gcn_w3"] + params["gcn_b3"]
    onehot = (batch[None, :] == jnp.arange(num_graphs)[:, None]).astype(f32)
    emb = (onehot / onehot.sum(axis=1, keepdims=True)) @ hp

    b = num_graphs
    src_len = ground_motion.shape[-1]
    cr = compression_rate
    lc = src_len // cr
    hid = params["whh0"].shape[0]
    src = jnp.concatenate(
        [ground_motion.reshape(b, lc, cr).astype(f32),
         jnp.broadcast_to(emb[:, None, :], (b, lc, emb.shape[-1]))], axis=2)

    def lstm_layer(xseq, wih, whh, bias):
        def step(carry, xt):
            h, c = carry
            gates = xt @ wih + h @ whh + bias[0]
            i, f, g, o = jnp.split(gates, 4, axis=-1)
            c = jax.nn.sigmoid(f) * c + jax.nn.sigmoid(i) * jnp.tanh(g)
            h = jax.nn.sigmoid(o) * jnp.tanh(c)
            return (h, c), h
        init = (jnp.zeros((b, hid), f32), jnp.zeros((b, hid), f32))
        _, ys = lax.scan(step, init, jnp.transpose(xseq, (1, 0, 2)))
        return jnp.transpose(ys, (1, 0, 2))

    y = lstm_layer(src, params["wih0"], params["whh0"], params["b0"])
    y = lstm_layer(y, params["wih1"], params["whh1"], params["b1"])
    comp_len = jnp.floor(seq_length_list.astype(f32) / cr)
    mask = (jnp.arange(lc, dtype=f32)[None, :] < comp_len[:, None]).astype(f32)
    y = y * mask[:, :, None]
    y = jax.nn.relu(y @ params["fc_w1"] + params["fc_b1"]) @ params["fc_w2"] + params["fc_b2"]
    return y.reshape(b, src_len // 10, max_story)


# ----------------------------------------------------------------------------
# Deterministic parameter init.
# ----------------------------------------------------------------------------
def init_params(key, input_dim, gcn_hid, gnn_embed_dim, lstm_hid, compression_rate,
                output_dim):
    ks = jax.random.split(key, 16)
    s = 0.1
    d_in = gnn_embed_dim + compression_rate
    return {
        "gcn_w1": s * jax.random.normal(ks[0], (input_dim, gcn_hid), jnp.float32),
        "gcn_b1": s * jax.random.normal(ks[1], (1, gcn_hid), jnp.float32),
        "gcn_w2": s * jax.random.normal(ks[2], (gcn_hid, gcn_hid * 2), jnp.float32),
        "gcn_b2": s * jax.random.normal(ks[3], (1, gcn_hid * 2), jnp.float32),
        "gcn_w3": s * jax.random.normal(ks[4], (gcn_hid * 2, gnn_embed_dim), jnp.float32),
        "gcn_b3": s * jax.random.normal(ks[5], (1, gnn_embed_dim), jnp.float32),
        "wih0": s * jax.random.normal(ks[6], (d_in, 4 * lstm_hid), jnp.float32),
        "whh0": s * jax.random.normal(ks[7], (lstm_hid, 4 * lstm_hid), jnp.float32),
        "b0": s * jax.random.normal(ks[8], (1, 4 * lstm_hid), jnp.float32),
        "wih1": s * jax.random.normal(ks[9], (lstm_hid, 4 * lstm_hid), jnp.float32),
        "whh1": s * jax.random.normal(ks[10], (lstm_hid, 4 * lstm_hid), jnp.float32),
        "b1": s * jax.random.normal(ks[11], (1, 4 * lstm_hid), jnp.float32),
        "fc_w1": s * jax.random.normal(ks[12], (lstm_hid, lstm_hid), jnp.float32),
        "fc_b1": s * jax.random.normal(ks[13], (1, lstm_hid), jnp.float32),
        "fc_w2": s * jax.random.normal(ks[14], (lstm_hid, output_dim), jnp.float32),
        "fc_b2": s * jax.random.normal(ks[15], (1, output_dim), jnp.float32),
    }


if __name__ == "__main__":
    # config (matches constructor semantics)
    input_dim = 4          # GCN node feature dim
    gcn_hid = 8            # GCN hid_dim -> conv2 out = 16
    gnn_embed_dim = 22
    lstm_hid = 32          # 4*hid = 128 lanes
    compression_rate = 10  # multiple of 10, >= 10
    max_story = 8
    output_dim = max_story * (compression_rate // 10)

    num_graphs = 2
    nodes_per_graph = 8
    n_nodes = num_graphs * nodes_per_graph
    src_len = 80           # divisible by compression_rate; trg_len = 8

    key = jax.random.PRNGKey(0)
    k_par, k_x, k_gm = jax.random.split(key, 3)
    params = init_params(k_par, input_dim, gcn_hid, gnn_embed_dim, lstm_hid,
                         compression_rate, output_dim)

    # Data.x
    x = jax.random.normal(k_x, (n_nodes, input_dim), jnp.float32)

    # Data.edge_index: bidirectional ring within each graph
    srcs, dsts = [], []
    for g in range(num_graphs):
        base = g * nodes_per_graph
        for i in range(nodes_per_graph):
            u, v = base + i, base + (i + 1) % nodes_per_graph
            srcs += [u, v]
            dsts += [v, u]
    edge_index = jnp.array([srcs, dsts], dtype=jnp.int32)

    # Data.batch
    batch = jnp.repeat(jnp.arange(num_graphs, dtype=jnp.int32), nodes_per_graph)

    # Data.ground_motion, Data.time_steps
    ground_motion = jax.random.normal(k_gm, (num_graphs, src_len), jnp.float32)
    time_steps = jnp.array([80.0, 60.0], dtype=jnp.float32)

    # Static per-structure / per-checkpoint preprocessing (hoisted out of the forward).
    bpad = _round_up(num_graphs, 8)
    npad = _round_up(n_nodes, 8)
    adj, pool_pad = build_graph_glue(edge_index, batch, n_nodes, num_graphs, bpad, npad)
    wslab = prepare_params(params, compression_rate)
    W = wslab.shape[1]
    x_pad = jnp.pad(x, ((0, npad - n_nodes), (0, W - input_dim)))

    fwd = jax.jit(functools.partial(gcn_lstm_forward,
                                    num_graphs=num_graphs,
                                    compression_rate=compression_rate,
                                    max_story=max_story,
                                    hid=lstm_hid))
    out = fwd(wslab, x_pad, adj, pool_pad, ground_motion, time_steps)
    out = jax.block_until_ready(out)

    assert out.shape == (num_graphs, src_len // 10, max_story), out.shape
    assert bool(jnp.all(jnp.isfinite(out)))

    # Reference comparison (catches gate-order / roll-direction / packing mistakes).
    with jax.default_matmul_precision("highest"):
        ref = reference_forward(params, x, edge_index, batch, ground_motion, time_steps,
                                num_graphs=num_graphs,
                                compression_rate=compression_rate,
                                max_story=max_story)
    err = float(jnp.max(jnp.abs(out - ref)))
    assert err < 2e-2, f"max abs error vs reference: {err}"
    print("KERNEL_OK")
</pallas_src>

<mosaic_0001>
module attributes {stable_mosaic.version = 11 : i64} {
  func.func @_gcn_lstm_kernel(%arg0: i32, %arg1: memref<16x16xf32, #tpu.memory_space<vmem>>, %arg2: memref<16x128xf32, #tpu.memory_space<vmem>>, %arg3: memref<8x16xf32, #tpu.memory_space<vmem>>, %arg4: memref<64x16xf32, #tpu.memory_space<vmem>>, %arg5: memref<1192x128xf32, #tpu.memory_space<vmem>>, %arg6: memref<64x128xf32, #tpu.memory_space<vmem>>, %arg7: memref<64x128xf32, #tpu.memory_space<vmem>>, %arg8: memref<64x128xf32, #tpu.memory_space<vmem>>) attributes {dimension_semantics = [#tpu.dimension_semantics<arbitrary>], iteration_bounds = array<i64: 1>, scalar_prefetch = 0 : i64, scratch_operands = 2 : i64, tpu.core_type = #tpu.core_type<tc>, window_params = [{pipeline_mode = #tpu.pipeline_mode<synchronous>, transform_indices = @transform_0, window_bounds = array<i64: 16, 16>}, {pipeline_mode = #tpu.pipeline_mode<synchronous>, transform_indices = @transform_1, window_bounds = array<i64: 16, 128>}, {pipeline_mode = #tpu.pipeline_mode<synchronous>, transform_indices = @transform_2, window_bounds = array<i64: 8, 16>}, {pipeline_mode = #tpu.pipeline_mode<synchronous>, transform_indices = @transform_3, window_bounds = array<i64: 64, 16>}, {pipeline_mode = #tpu.pipeline_mode<synchronous>, transform_indices = @transform_4, window_bounds = array<i64: 1192, 128>}, {pipeline_mode = #tpu.pipeline_mode<synchronous>, transform_indices = @transform_5, window_bounds = array<i64: 64, 128>}]} {
    %c0 = arith.constant 0 : index
    %c0_0 = arith.constant 0 : index
    %0 = vector.load %arg1[%c0, %c0_0] : memref<16x16xf32, #tpu.memory_space<vmem>>, vector<16x16xf32>
    %c0_1 = arith.constant 0 : index
    %c0_2 = arith.constant 0 : index
    %1 = vector.load %arg2[%c0_1, %c0_2] : memref<16x128xf32, #tpu.memory_space<vmem>>, vector<16x128xf32>
    %cst = arith.constant dense<0.000000e+00> : vector<16x128xf32>
    %2 = tpu.matmul %0, %1, %cst {dimension_numbers = #tpu.dot_dimension_numbers<[1], [0], [0], [1], [0, 0, 1, 1], [], []>} : vector<16x16xf32>, vector<16x128xf32>, vector<16x128xf32> -> vector<16x128xf32>
    %c0_3 = arith.constant 0 : index
    %c0_4 = arith.constant 0 : index
    %3 = vector.load %arg5[%c0_3, %c0_4] : memref<1192x128xf32, #tpu.memory_space<vmem>>, vector<128x128xf32>
    %cst_5 = arith.constant dense<0.000000e+00> : vector<16x128xf32>
    %4 = tpu.matmul %2, %3, %cst_5 {dimension_numbers = #tpu.dot_dimension_numbers<[1], [0], [0], [1], [0, 0, 1, 1], [], []>} : vector<16x128xf32>, vector<128x128xf32>, vector<16x128xf32> -> vector<16x128xf32>
    %c1184 = arith.constant 1184 : index
    %c0_6 = arith.constant 0 : index
    %5 = vector.load %arg5[%c1184, %c0_6] : memref<1192x128xf32, #tpu.memory_space<vmem>>, vector<1x128xf32>
    %6 = vector.broadcast %5 : vector<1x128xf32> to vector<16x128xf32>
    %7 = arith.addf %4, %6 : vector<16x128xf32>
    %cst_7 = arith.constant 0.000000e+00 : f32
    %8 = vector.broadcast %cst_7 : f32 to vector<16x128xf32>
    %9 = arith.maximumf %7, %8 : vector<16x128xf32>
    %cst_8 = arith.constant dense<0.000000e+00> : vector<16x128xf32>
    %10 = tpu.matmul %0, %9, %cst_8 {dimension_numbers = #tpu.dot_dimension_numbers<[1], [0], [0], [1], [0, 0, 1, 1], [], []>} : vector<16x16xf32>, vector<16x128xf32>, vector<16x128xf32> -> vector<16x128xf32>
    %c128 = arith.constant 128 : index
    %c0_9 = arith.constant 0 : index
    %11 = vector.load %arg5[%c128, %c0_9] : memref<1192x128xf32, #tpu.memory_space<vmem>>, vector<128x128xf32>
    %cst_10 = arith.constant dense<0.000000e+00> : vector<16x128xf32>
    %12 = tpu.matmul %10, %11, %cst_10 {dimension_numbers = #tpu.dot_dimension_numbers<[1], [0], [0], [1], [0, 0, 1, 1], [], []>} : vector<16x128xf32>, vector<128x128xf32>, vector<16x128xf32> -> vector<16x128xf32>
    %c1185 = arith.constant 1185 : index
    %c0_11 = arith.constant 0 : index
    %13 = vector.load %arg5[%c1185, %c0_11] : memref<1192x128xf32, #tpu.memory_space<vmem>>, vector<1x128xf32>
    %14 = vector.broadcast %13 : vector<1x128xf32> to vector<16x128xf32>
    %15 = arith.addf %12, %14 : vector<16x128xf32>
    %cst_12 = arith.constant 0.000000e+00 : f32
    %16 = vector.broadcast %cst_12 : f32 to vector<16x128xf32>
    %17 = arith.maximumf %15, %16 : vector<16x128xf32>
    %cst_13 = arith.constant dense<0.000000e+00> : vector<16x128xf32>
    %18 = tpu.matmul %0, %17, %cst_13 {dimension_numbers = #tpu.dot_dimension_numbers<[1], [0], [0], [1], [0, 0, 1, 1], [], []>} : vector<16x16xf32>, vector<16x128xf32>, vector<16x128xf32> -> vector<16x128xf32>
    %c256 = arith.constant 256 : index
    %c0_14 = arith.constant 0 : index
    %19 = vector.load %arg5[%c256, %c0_14] : memref<1192x128xf32, #tpu.memory_space<vmem>>, vector<128x128xf32>
    %cst_15 = arith.constant dense<0.000000e+00> : vector<16x128xf32>
    %20 = tpu.matmul %18, %19, %cst_15 {dimension_numbers = #tpu.dot_dimension_numbers<[1], [0], [0], [1], [0, 0, 1, 1], [], []>} : vector<16x128xf32>, vector<128x128xf32>, vector<16x128xf32> -> vector<16x128xf32>
    %c1186 = arith.constant 1186 : index
    %c0_16 = arith.constant 0 : index
    %21 = vector.load %arg5[%c1186, %c0_16] : memref<1192x128xf32, #tpu.memory_space<vmem>>, vector<1x128xf32>
    %22 = vector.broadcast %21 : vector<1x128xf32> to vector<16x128xf32>
    %23 = arith.addf %20, %22 : vector<16x128xf32>
    %c0_17 = arith.constant 0 : index
    %c0_18 = arith.constant 0 : index
    %24 = vector.load %arg3[%c0_17, %c0_18] : memref<8x16xf32, #tpu.memory_space<vmem>>, vector<8x16xf32>
    %cst_19 = arith.constant dense<0.000000e+00> : vector<8x128xf32>
    %25 = tpu.matmul %24, %23, %cst_19 {dimension_numbers = #tpu.dot_dimension_numbers<[1], [0], [0], [1], [0, 0, 1, 1], [], []>} : vector<8x16xf32>, vector<16x128xf32>, vector<8x128xf32> -> vector<8x128xf32>
    %c384 = arith.constant 384 : index
    %c0_20 = arith.constant 0 : index
    %26 = vector.load %arg5[%c384, %c0_20] : memref<1192x128xf32, #tpu.memory_space<vmem>>, vector<128x128xf32>
    %cst_21 = arith.constant dense<0.000000e+00> : vector<8x128xf32>
    %27 = tpu.matmul %25, %26, %cst_21 {dimension_numbers = #tpu.dot_dimension_numbers<[1], [0], [0], [1], [0, 0, 1, 1], [], []>} : vector<8x128xf32>, vector<128x128xf32>, vector<8x128xf32> -> vector<8x128xf32>
    %c1187 = arith.constant 1187 : index
    %c0_22 = arith.constant 0 : index
    %28 = vector.load %arg5[%c1187, %c0_22] : memref<1192x128xf32, #tpu.memory_space<vmem>>, vector<1x128xf32>
    %29 = vector.broadcast %28 : vector<1x128xf32> to vector<8x128xf32>
    %30 = arith.addf %27, %29 : vector<8x128xf32>
    %c0_23 = arith.constant 0 : index
    %c0_24 = arith.constant 0 : index
    %31 = vector.load %arg4[%c0_23, %c0_24] : memref<64x16xf32, #tpu.memory_space<vmem>>, vector<64x16xf32>
    %c1152 = arith.constant 1152 : index
    %c0_25 = arith.constant 0 : index
    %32 = vector.load %arg5[%c1152, %c0_25] : memref<1192x128xf32, #tpu.memory_space<vmem>>, vector<16x128xf32>
    %cst_26 = arith.constant dense<0.000000e+00> : vector<64x128xf32>
    %33 = tpu.matmul %31, %32, %cst_26 {dimension_numbers = #tpu.dot_dimension_numbers<[1], [0], [0], [1], [0, 0, 1, 1], [], []>} : vector<64x16xf32>, vector<16x128xf32>, vector<64x128xf32> -> vector<64x128xf32>
    %34 = vector.extract_strided_slice %33 {offsets = [0, 0], sizes = [8, 128], strides = [1, 1]} : vector<64x128xf32> to vector<8x128xf32>
    %35 = arith.addf %34, %30 : vector<8x128xf32>
    %c0_27 = arith.constant 0 : index
    %c0_28 = arith.constant 0 : index
    %36 = vector.load %arg8[%c0_27, %c0_28] : memref<64x128xf32, #tpu.memory_space<vmem>>, vector<8x128xf32>
    tpu.vector_store %arg8[%c0_27, %c0_28], %35 {strides = array<i32>} : memref<64x128xf32, #tpu.memory_space<vmem>>, vector<8x128xf32>,
    %37 = vector.extract_strided_slice %33 {offsets = [8, 0], sizes = [8, 128], strides = [1, 1]} : vector<64x128xf32> to vector<8x128xf32>
    %38 = arith.addf %37, %30 : vector<8x128xf32>
    %c8 = arith.constant 8 : index
    %c0_29 = arith.constant 0 : index
    %39 = vector.load %arg8[%c8, %c0_29] : memref<64x128xf32, #tpu.memory_space<vmem>>, vector<8x128xf32>
    tpu.vector_store %arg8[%c8, %c0_29], %38 {strides = array<i32>} : memref<64x128xf32, #tpu.memory_space<vmem>>, vector<8x128xf32>,
    %40 = vector.extract_strided_slice %33 {offsets = [16, 0], sizes = [8, 128], strides = [1, 1]} : vector<64x128xf32> to vector<8x128xf32>
    %41 = arith.addf %40, %30 : vector<8x128xf32>
    %c16 = arith.constant 16 : index
    %c0_30 = arith.constant 0 : index
    %42 = vector.load %arg8[%c16, %c0_30] : memref<64x128xf32, #tpu.memory_space<vmem>>, vector<8x128xf32>
    tpu.vector_store %arg8[%c16, %c0_30], %41 {strides = array<i32>} : memref<64x128xf32, #tpu.memory_space<vmem>>, vector<8x128xf32>,
    %43 = vector.extract_strided_slice %33 {offsets = [24, 0], sizes = [8, 128], strides = [1, 1]} : vector<64x128xf32> to vector<8x128xf32>
    %44 = arith.addf %43, %30 : vector<8x128xf32>
    %c24 = arith.constant 24 : index
    %c0_31 = arith.constant 0 : index
    %45 = vector.load %arg8[%c24, %c0_31] : memref<64x128xf32, #tpu.memory_space<vmem>>, vector<8x128xf32>
    tpu.vector_store %arg8[%c24, %c0_31], %44 {strides = array<i32>} : memref<64x128xf32, #tpu.memory_space<vmem>>, vector<8x128xf32>,
    %46 = vector.extract_strided_slice %33 {offsets = [32, 0], sizes = [8, 128], strides = [1, 1]} : vector<64x128xf32> to vector<8x128xf32>
    %47 = arith.addf %46, %30 : vector<8x128xf32>
    %c32 = arith.constant 32 : index
    %c0_32 = arith.constant 0 : index
    %48 = vector.load %arg8[%c32, %c0_32] : memref<64x128xf32, #tpu.memory_space<vmem>>, vector<8x128xf32>
    tpu.vector_store %arg8[%c32, %c0_32], %47 {strides = array<i32>} : memref<64x128xf32, #tpu.memory_space<vmem>>, vector<8x128xf32>,
    %49 = vector.extract_strided_slice %33 {offsets = [40, 0], sizes = [8, 128], strides = [1, 1]} : vector<64x128xf32> to vector<8x128xf32>
    %50 = arith.addf %49, %30 : vector<8x128xf32>
    %c40 = arith.constant 40 : index
    %c0_33 = arith.constant 0 : index
    %51 = vector.load %arg8[%c40, %c0_33] : memref<64x128xf32, #tpu.memory_space<vmem>>, vector<8x128xf32>
    tpu.vector_store %arg8[%c40, %c0_33], %50 {strides = array<i32>} : memref<64x128xf32, #tpu.memory_space<vmem>>, vector<8x128xf32>,
    %52 = vector.extract_strided_slice %33 {offsets = [48, 0], sizes = [8, 128], strides = [1, 1]} : vector<64x128xf32> to vector<8x128xf32>
    %53 = arith.addf %52, %30 : vector<8x128xf32>
    %c48 = arith.constant 48 : index
    %c0_34 = arith.constant 0 : index
    %54 = vector.load %arg8[%c48, %c0_34] : memref<64x128xf32, #tpu.memory_space<vmem>>, vector<8x128xf32>
    tpu.vector_store %arg8[%c48, %c0_34], %53 {strides = array<i32>} : memref<64x128xf32, #tpu.memory_space<vmem>>, vector<8x128xf32>,
    %55 = vector.extract_strided_slice %33 {offsets = [56, 0], sizes = [8, 128], strides = [1, 1]} : vector<64x128xf32> to vector<8x128xf32>
    %56 = arith.addf %55, %30 : vector<8x128xf32>
    %c56 = arith.constant 56 : index
    %c0_35 = arith.constant 0 : index
    %57 = vector.load %arg8[%c56, %c0_35] : memref<64x128xf32, #tpu.memory_space<vmem>>, vector<8x128xf32>
    tpu.vector_store %arg8[%c56, %c0_35], %56 {strides = array<i32>} : memref<64x128xf32, #tpu.memory_space<vmem>>, vector<8x128xf32>,
    %58 = tpu.iota {dimensions = array<i32: 1>} : vector<8x128xi32>
    %c64_i32 = arith.constant 64 : i32
    %59 = vector.broadcast %c64_i32 : i32 to vector<8x128xi32>
    %60 = arith.cmpi sge, %58, %59 : vector<8x128xi32>
    %c96_i32 = arith.constant 96 : i32
    %61 = vector.broadcast %c96_i32 : i32 to vector<8x128xi32>
    %62 = arith.cmpi slt, %58, %61 : vector<8x128xi32>
    %63 = arith.andi %60, %62 : vector<8x128xi1>
    %c512 = arith.constant 512 : index
    %c0_36 = arith.constant 0 : index
    %64 = vector.load %arg5[%c512, %c0_36] : memref<1192x128xf32, #tpu.memory_space<vmem>>, vector<128x128xf32>
    %c640 = arith.constant 640 : index
    %c0_37 = arith.constant 0 : index
    %65 = vector.load %arg5[%c640, %c0_37] : memref<1192x128xf32, #tpu.memory_space<vmem>>, vector<128x128xf32>
    %c768 = arith.constant 768 : index
    %c0_38 = arith.constant 0 : index
    %66 = vector.load %arg5[%c768, %c0_38] : memref<1192x128xf32, #tpu.memory_space<vmem>>, vector<128x128xf32>
    %c1188 = arith.constant 1188 : index
    %c0_39 = arith.constant 0 : index
    %67 = vector.load %arg5[%c1188, %c0_39] : memref<1192x128xf32, #tpu.memory_space<vmem>>, vector<1x128xf32>
    %cst_40 = arith.constant 0.000000e+00 : f32
    %68 = vector.broadcast %cst_40 : f32 to vector<8x128xf32>
    %c0_41 = arith.constant 0 : index
    %c0_42 = arith.constant 0 : index
    %69 = vector.load %arg8[%c0_41, %c0_42] : memref<64x128xf32, #tpu.memory_space<vmem>>, vector<8x128xf32>
    %cst_43 = arith.constant dense<0.000000e+00> : vector<8x128xf32>
    %70 = tpu.matmul %68, %64, %cst_43 {dimension_numbers = #tpu.dot_dimension_numbers<[1], [0], [0], [1], [0, 0, 1, 1], [], []>} : vector<8x128xf32>, vector<128x128xf32>, vector<8x128xf32> -> vector<8x128xf32>
    %71 = arith.addf %69, %70 : vector<8x128xf32>
    %72 = arith.addf %71, %71 : vector<8x128xf32>
    %73 = arith.select %63, %72, %71 : vector<8x128xi1>, vector<8x128xf32>
    %74 = arith.negf %73 : vector<8x128xf32>
    %75 = math.exp %74 : vector<8x128xf32>
    %cst_44 = arith.constant 1.000000e+00 : f32
    %76 = vector.broadcast %cst_44 : f32 to vector<8x128xf32>
    %77 = arith.addf %76, %75 : vector<8x128xf32>
    %78 = arith.divf %76, %77 : vector<8x128xf32>
    %79 = arith.addf %78, %78 : vector<8x128xf32>
    %cst_45 = arith.constant 1.000000e+00 : f32
    %80 = vector.broadcast %cst_45 : f32 to vector<8x128xf32>
    %81 = arith.subf %79, %80 : vector<8x128xf32>
    %82 = arith.select %63, %81, %78 : vector<8x128xi1>, vector<8x128xf32>
    %c96_i32_46 = arith.constant 96 : i32
    %83 = tpu.dynamic_rotate %82 by %c96_i32_46 dim 1 : vector<8x128xf32>, i32 -> vector<8x128xf32>
    %c64_i32_47 = arith.constant 64 : i32
    %84 = tpu.dynamic_rotate %82 by %c64_i32_47 dim 1 : vector<8x128xf32>, i32 -> vector<8x128xf32>
    %c32_i32 = arith.constant 32 : i32
    %85 = tpu.dynamic_rotate %82 by %c32_i32 dim 1 : vector<8x128xf32>, i32 -> vector<8x128xf32>
    %86 = arith.mulf %83, %68 : vector<8x128xf32>
    %87 = arith.mulf %82, %84 : vector<8x128xf32>
    %88 = arith.addf %86, %87 : vector<8x128xf32>
    %89 = math.tanh %88 : vector<8x128xf32>
    %90 = arith.mulf %85, %89 : vector<8x128xf32>
    %cst_48 = arith.constant dense<0.000000e+00> : vector<8x128xf32>
    %91 = tpu.matmul %90, %65, %cst_48 {dimension_numbers = #tpu.dot_dimension_numbers<[1], [0], [0], [1], [0, 0, 1, 1], [], []>} : vector<8x128xf32>, vector<128x128xf32>, vector<8x128xf32> -> vector<8x128xf32>
    %cst_49 = arith.constant dense<0.000000e+00> : vector<8x128xf32>
    %92 = tpu.matmul %68, %66, %cst_49 {dimension_numbers = #tpu.dot_dimension_numbers<[1], [0], [0], [1], [0, 0, 1, 1], [], []>} : vector<8x128xf32>, vector<128x128xf32>, vector<8x128xf32> -> vector<8x128xf32>
    %93 = arith.addf %91, %92 : vector<8x128xf32>
    %94 = vector.broadcast %67 : vector<1x128xf32> to vector<8x128xf32>
    %95 = arith.addf %93, %94 : vector<8x128xf32>
    %96 = arith.addf %95, %95 : vector<8x128xf32>
    %97 = arith.select %63, %96, %95 : vector<8x128xi1>, vector<8x128xf32>
    %98 = arith.negf %97 : vector<8x128xf32>
    %99 = math.exp %98 : vector<8x128xf32>
    %cst_50 = arith.constant 1.000000e+00 : f32
    %100 = vector.broadcast %cst_50 : f32 to vector<8x128xf32>
    %101 = arith.addf %100, %99 : vector<8x128xf32>
    %102 = arith.divf %100, %101 : vector<8x128xf32>
    %103 = arith.addf %102, %102 : vector<8x128xf32>
    %cst_51 = arith.constant 1.000000e+00 : f32
    %104 = vector.broadcast %cst_51 : f32 to vector<8x128xf32>
    %105 = arith.subf %103, %104 : vector<8x128xf32>
    %106 = arith.select %63, %105, %102 : vector<8x128xi1>, vector<8x128xf32>
    %c96_i32_52 = arith.constant 96 : i32
    %107 = tpu.dynamic_rotate %106 by %c96_i32_52 dim 1 : vector<8x128xf32>, i32 -> vector<8x128xf32>
    %c64_i32_53 = arith.constant 64 : i32
    %108 = tpu.dynamic_rotate %106 by %c64_i32_53 dim 1 : vector<8x128xf32>, i32 -> vector<8x128xf32>
    %c32_i32_54 = arith.constant 32 : i32
    %109 = tpu.dynamic_rotate %106 by %c32_i32_54 dim 1 : vector<8x128xf32>, i32 -> vector<8x128xf32>
    %110 = arith.mulf %107, %68 : vector<8x128xf32>
    %111 = arith.mulf %106, %108 : vector<8x128xf32>
    %112 = arith.addf %110, %111 : vector<8x128xf32>
    %113 = math.tanh %112 : vector<8x128xf32>
    %114 = arith.mulf %109, %113 : vector<8x128xf32>
    %c0_55 = arith.constant 0 : index
    %c0_56 = arith.constant 0 : index
    %115 = vector.load %arg7[%c0_55, %c0_56] : memref<64x128xf32, #tpu.memory_space<vmem>>, vector<8x128xf32>
    tpu.vector_store %arg7[%c0_55, %c0_56], %114 {strides = array<i32>} : memref<64x128xf32, #tpu.memory_space<vmem>>, vector<8x128xf32>,
    %c8_57 = arith.constant 8 : index
    %c0_58 = arith.constant 0 : index
    %116 = vector.load %arg8[%c8_57, %c0_58] : memref<64x128xf32, #tpu.memory_space<vmem>>, vector<8x128xf32>
    %cst_59 = arith.constant dense<0.000000e+00> : vector<8x128xf32>
    %117 = tpu.matmul %90, %64, %cst_59 {dimension_numbers = #tpu.dot_dimension_numbers<[1], [0], [0], [1], [0, 0, 1, 1], [], []>} : vector<8x128xf32>, vector<128x128xf32>, vector<8x128xf32> -> vector<8x128xf32>
    %118 = arith.addf %116, %117 : vector<8x128xf32>
    %119 = arith.addf %118, %118 : vector<8x128xf32>
    %120 = arith.select %63, %119, %118 : vector<8x128xi1>, vector<8x128xf32>
    %121 = arith.negf %120 : vector<8x128xf32>
    %122 = math.exp %121 : vector<8x128xf32>
    %cst_60 = arith.constant 1.000000e+00 : f32
    %123 = vector.broadcast %cst_60 : f32 to vector<8x128xf32>
    %124 = arith.addf %123, %122 : vector<8x128xf32>
    %125 = arith.divf %123, %124 : vector<8x128xf32>
    %126 = arith.addf %125, %125 : vector<8x128xf32>
    %cst_61 = arith.constant 1.000000e+00 : f32
    %127 = vector.broadcast %cst_61 : f32 to vector<8x128xf32>
    %128 = arith.subf %126, %127 : vector<8x128xf32>
    %129 = arith.select %63, %128, %125 : vector<8x128xi1>, vector<8x128xf32>
    %c96_i32_62 = arith.constant 96 : i32
    %130 = tpu.dynamic_rotate %129 by %c96_i32_62 dim 1 : vector<8x128xf32>, i32 -> vector<8x128xf32>
    %c64_i32_63 = arith.constant 64 : i32
    %131 = tpu.dynamic_rotate %129 by %c64_i32_63 dim 1 : vector<8x128xf32>, i32 -> vector<8x128xf32>
    %c32_i32_64 = arith.constant 32 : i32
    %132 = tpu.dynamic_rotate %129 by %c32_i32_64 dim 1 : vector<8x128xf32>, i32 -> vector<8x128xf32>
    %133 = arith.mulf %130, %88 : vector<8x128xf32>
    %134 = arith.mulf %129, %131 : vector<8x128xf32>
    %135 = arith.addf %133, %134 : vector<8x128xf32>
    %136 = math.tanh %135 : vector<8x128xf32>
    %137 = arith.mulf %132, %136 : vector<8x128xf32>
    %cst_65 = arith.constant dense<0.000000e+00> : vector<8x128xf32>
    %138 = tpu.matmul %137, %65, %cst_65 {dimension_numbers = #tpu.dot_dimension_numbers<[1], [0], [0], [1], [0, 0, 1, 1], [], []>} : vector<8x128xf32>, vector<128x128xf32>, vector<8x128xf32> -> vector<8x128xf32>
    %cst_66 = arith.constant dense<0.000000e+00> : vector<8x128xf32>
    %139 = tpu.matmul %114, %66, %cst_66 {dimension_numbers = #tpu.dot_dimension_numbers<[1], [0], [0], [1], [0, 0, 1, 1], [], []>} : vector<8x128xf32>, vector<128x128xf32>, vector<8x128xf32> -> vector<8x128xf32>
    %140 = arith.addf %138, %139 : vector<8x128xf32>
    %141 = vector.broadcast %67 : vector<1x128xf32> to vector<8x128xf32>
    %142 = arith.addf %140, %141 : vector<8x128xf32>
    %143 = arith.addf %142, %142 : vector<8x128xf32>
    %144 = arith.select %63, %143, %142 : vector<8x128xi1>, vector<8x128xf32>
    %145 = arith.negf %144 : vector<8x128xf32>
    %146 = math.exp %145 : vector<8x128xf32>
    %cst_67 = arith.constant 1.000000e+00 : f32
    %147 = vector.broadcast %cst_67 : f32 to vector<8x128xf32>
    %148 = arith.addf %147, %146 : vector<8x128xf32>
    %149 = arith.divf %147, %148 : vector<8x128xf32>
    %150 = arith.addf %149, %149 : vector<8x128xf32>
    %cst_68 = arith.constant 1.000000e+00 : f32
    %151 = vector.broadcast %cst_68 : f32 to vector<8x128xf32>
    %152 = arith.subf %150, %151 : vector<8x128xf32>
    %153 = arith.select %63, %152, %149 : vector<8x128xi1>, vector<8x128xf32>
    %c96_i32_69 = arith.constant 96 : i32
    %154 = tpu.dynamic_rotate %153 by %c96_i32_69 dim 1 : vector<8x128xf32>, i32 -> vector<8x128xf32>
    %c64_i32_70 = arith.constant 64 : i32
    %155 = tpu.dynamic_rotate %153 by %c64_i32_70 dim 1 : vector<8x128xf32>, i32 -> vector<8x128xf32>
    %c32_i32_71 = arith.constant 32 : i32
    %156 = tpu.dynamic_rotate %153 by %c32_i32_71 dim 1 : vector<8x128xf32>, i32 -> vector<8x128xf32>
    %157 = arith.mulf %154, %112 : vector<8x128xf32>
    %158 = arith.mulf %153, %155 : vector<8x128xf32>
    %159 = arith.addf %157, %158 : vector<8x128xf32>
    %160 = math.tanh %159 : vector<8x128xf32>
    %161 = arith.mulf %156, %160 : vector<8x128xf32>
    %c8_72 = arith.constant 8 : index
    %c0_73 = arith.constant 0 : index
    %162 = vector.load %arg7[%c8_72, %c0_73] : memref<64x128xf32, #tpu.memory_space<vmem>>, vector<8x128xf32>
    tpu.vector_store %arg7[%c8_72, %c0_73], %161 {strides = array<i32>} : memref<64x128xf32, #tpu.memory_space<vmem>>, vector<8x128xf32>,
    %c16_74 = arith.constant 16 : index
    %c0_75 = arith.constant 0 : index
    %163 = vector.load %arg8[%c16_74, %c0_75] : memref<64x128xf32, #tpu.memory_space<vmem>>, vector<8x128xf32>
    %cst_76 = arith.constant dense<0.000000e+00> : vector<8x128xf32>
    %164 = tpu.matmul %137, %64, %cst_76 {dimension_numbers = #tpu.dot_dimension_numbers<[1], [0], [0], [1], [0, 0, 1, 1], [], []>} : vector<8x128xf32>, vector<128x128xf32>, vector<8x128xf32> -> vector<8x128xf32>
    %165 = arith.addf %163, %164 : vector<8x128xf32>
    %166 = arith.addf %165, %165 : vector<8x128xf32>
    %167 = arith.select %63, %166, %165 : vector<8x128xi1>, vector<8x128xf32>
    %168 = arith.negf %167 : vector<8x128xf32>
    %169 = math.exp %168 : vector<8x128xf32>
    %cst_77 = arith.constant 1.000000e+00 : f32
    %170 = vector.broadcast %cst_77 : f32 to vector<8x128xf32>
    %171 = arith.addf %170, %169 : vector<8x128xf32>
    %172 = arith.divf %170, %171 : vector<8x128xf32>
    %173 = arith.addf %172, %172 : vector<8x128xf32>
    %cst_78 = arith.constant 1.000000e+00 : f32
    %174 = vector.broadcast %cst_78 : f32 to vector<8x128xf32>
    %175 = arith.subf %173, %174 : vector<8x128xf32>
    %176 = arith.select %63, %175, %172 : vector<8x128xi1>, vector<8x128xf32>
    %c96_i32_79 = arith.constant 96 : i32
    %177 = tpu.dynamic_rotate %176 by %c96_i32_79 dim 1 : vector<8x128xf32>, i32 -> vector<8x128xf32>
    %c64_i32_80 = arith.constant 64 : i32
    %178 = tpu.dynamic_rotate %176 by %c64_i32_80 dim 1 : vector<8x128xf32>, i32 -> vector<8x128xf32>
    %c32_i32_81 = arith.constant 32 : i32
    %179 = tpu.dynamic_rotate %176 by %c32_i32_81 dim 1 : vector<8x128xf32>, i32 -> vector<8x128xf32>
    %180 = arith.mulf %177, %135 : vector<8x128xf32>
    %181 = arith.mulf %176, %178 : vector<8x128xf32>
    %182 = arith.addf %180, %181 : vector<8x128xf32>
    %183 = math.tanh %182 : vector<8x128xf32>
    %184 = arith.mulf %179, %183 : vector<8x128xf32>
    %cst_82 = arith.constant dense<0.000000e+00> : vector<8x128xf32>
    %185 = tpu.matmul %184, %65, %cst_82 {dimension_numbers = #tpu.dot_dimension_numbers<[1], [0], [0], [1], [0, 0, 1, 1], [], []>} : vector<8x128xf32>, vector<128x128xf32>, vector<8x128xf32> -> vector<8x128xf32>
    %cst_83 = arith.constant dense<0.000000e+00> : vector<8x128xf32>
    %186 = tpu.matmul %161, %66, %cst_83 {dimension_numbers = #tpu.dot_dimension_numbers<[1], [0], [0], [1], [0, 0, 1, 1], [], []>} : vector<8x128xf32>, vector<128x128xf32>, vector<8x128xf32> -> vector<8x128xf32>
    %187 = arith.addf %185, %186 : vector<8x128xf32>
    %188 = vector.broadcast %67 : vector<1x128xf32> to vector<8x128xf32>
    %189 = arith.addf %187, %188 : vector<8x128xf32>
    %190 = arith.addf %189, %189 : vector<8x128xf32>
    %191 = arith.select %63, %190, %189 : vector<8x128xi1>, vector<8x128xf32>
    %192 = arith.negf %191 : vector<8x128xf32>
    %193 = math.exp %192 : vector<8x128xf32>
    %cst_84 = arith.constant 1.000000e+00 : f32
    %194 = vector.broadcast %cst_84 : f32 to vector<8x128xf32>
    %195 = arith.addf %194, %193 : vector<8x128xf32>
    %196 = arith.divf %194, %195 : vector<8x128xf32>
    %197 = arith.addf %196, %196 : vector<8x128xf32>
    %cst_85 = arith.constant 1.000000e+00 : f32
    %198 = vector.broadcast %cst_85 : f32 to vector<8x128xf32>
    %199 = arith.subf %197, %198 : vector<8x128xf32>
    %200 = arith.select %63, %199, %196 : vector<8x128xi1>, vector<8x128xf32>
    %c96_i32_86 = arith.constant 96 : i32
    %201 = tpu.dynamic_rotate %200 by %c96_i32_86 dim 1 : vector<8x128xf32>, i32 -> vector<8x128xf32>
    %c64_i32_87 = arith.constant 64 : i32
    %202 = tpu.dynamic_rotate %200 by %c64_i32_87 dim 1 : vector<8x128xf32>, i32 -> vector<8x128xf32>
    %c32_i32_88 = arith.constant 32 : i32
    %203 = tpu.dynamic_rotate %200 by %c32_i32_88 dim 1 : vector<8x128xf32>, i32 -> vector<8x128xf32>
    %204 = arith.mulf %201, %159 : vector<8x128xf32>
    %205 = arith.mulf %200, %202 : vector<8x128xf32>
    %206 = arith.addf %204, %205 : vector<8x128xf32>
    %207 = math.tanh %206 : vector<8x128xf32>
    %208 = arith.mulf %203, %207 : vector<8x128xf32>
    %c16_89 = arith.constant 16 : index
    %c0_90 = arith.constant 0 : index
    %209 = vector.load %arg7[%c16_89, %c0_90] : memref<64x128xf32, #tpu.memory_space<vmem>>, vector<8x128xf32>
    tpu.vector_store %arg7[%c16_89, %c0_90], %208 {strides = array<i32>} : memref<64x128xf32, #tpu.memory_space<vmem>>, vector<8x128xf32>,
    %c24_91 = arith.constant 24 : index
    %c0_92 = arith.constant 0 : index
    %210 = vector.load %arg8[%c24_91, %c0_92] : memref<64x128xf32, #tpu.memory_space<vmem>>, vector<8x128xf32>
    %cst_93 = arith.constant dense<0.000000e+00> : vector<8x128xf32>
    %211 = tpu.matmul %184, %64, %cst_93 {dimension_numbers = #tpu.dot_dimension_numbers<[1], [0], [0], [1], [0, 0, 1, 1], [], []>} : vector<8x128xf32>, vector<128x128xf32>, vector<8x128xf32> -> vector<8x128xf32>
    %212 = arith.addf %210, %211 : vector<8x128xf32>
    %213 = arith.addf %212, %212 : vector<8x128xf32>
    %214 = arith.select %63, %213, %212 : vector<8x128xi1>, vector<8x128xf32>
    %215 = arith.negf %214 : vector<8x128xf32>
    %216 = math.exp %215 : vector<8x128xf32>
    %cst_94 = arith.constant 1.000000e+00 : f32
    %217 = vector.broadcast %cst_94 : f32 to vector<8x128xf32>
    %218 = arith.addf %217, %216 : vector<8x128xf32>
    %219 = arith.divf %217, %218 : vector<8x128xf32>
    %220 = arith.addf %219, %219 : vector<8x128xf32>
    %cst_95 = arith.constant 1.000000e+00 : f32
    %221 = vector.broadcast %cst_95 : f32 to vector<8x128xf32>
    %222 = arith.subf %220, %221 : vector<8x128xf32>
    %223 = arith.select %63, %222, %219 : vector<8x128xi1>, vector<8x128xf32>
    %c96_i32_96 = arith.constant 96 : i32
    %224 = tpu.dynamic_rotate %223 by %c96_i32_96 dim 1 : vector<8x128xf32>, i32 -> vector<8x128xf32>
    %c64_i32_97 = arith.constant 64 : i32
    %225 = tpu.dynamic_rotate %223 by %c64_i32_97 dim 1 : vector<8x128xf32>, i32 -> vector<8x128xf32>
    %c32_i32_98 = arith.constant 32 : i32
    %226 = tpu.dynamic_rotate %223 by %c32_i32_98 dim 1 : vector<8x128xf32>, i32 -> vector<8x128xf32>
    %227 = arith.mulf %224, %182 : vector<8x128xf32>
    %228 = arith.mulf %223, %225 : vector<8x128xf32>
    %229 = arith.addf %227, %228 : vector<8x128xf32>
    %230 = math.tanh %229 : vector<8x128xf32>
    %231 = arith.mulf %226, %230 : vector<8x128xf32>
    %cst_99 = arith.constant dense<0.000000e+00> : vector<8x128xf32>
    %232 = tpu.matmul %231, %65, %cst_99 {dimension_numbers = #tpu.dot_dimension_numbers<[1], [0], [0], [1], [0, 0, 1, 1], [], []>} : vector<8x128xf32>, vector<128x128xf32>, vector<8x128xf32> -> vector<8x128xf32>
    %cst_100 = arith.constant dense<0.000000e+00> : vector<8x128xf32>
    %233 = tpu.matmul %208, %66, %cst_100 {dimension_numbers = #tpu.dot_dimension_numbers<[1], [0], [0], [1], [0, 0, 1, 1], [], []>} : vector<8x128xf32>, vector<128x128xf32>, vector<8x128xf32> -> vector<8x128xf32>
    %234 = arith.addf %232, %233 : vector<8x128xf32>
    %235 = vector.broadcast %67 : vector<1x128xf32> to vector<8x128xf32>
    %236 = arith.addf %234, %235 : vector<8x128xf32>
    %237 = arith.addf %236, %236 : vector<8x128xf32>
    %238 = arith.select %63, %237, %236 : vector<8x128xi1>, vector<8x128xf32>
    %239 = arith.negf %238 : vector<8x128xf32>
    %240 = math.exp %239 : vector<8x128xf32>
    %cst_101 = arith.constant 1.000000e+00 : f32
    %241 = vector.broadcast %cst_101 : f32 to vector<8x128xf32>
    %242 = arith.addf %241, %240 : vector<8x128xf32>
    %243 = arith.divf %241, %242 : vector<8x128xf32>
    %244 = arith.addf %243, %243 : vector<8x128xf32>
    %cst_102 = arith.constant 1.000000e+00 : f32
    %245 = vector.broadcast %cst_102 : f32 to vector<8x128xf32>
    %246 = arith.subf %244, %245 : vector<8x128xf32>
    %247 = arith.select %63, %246, %243 : vector<8x128xi1>, vector<8x128xf32>
    %c96_i32_103 = arith.constant 96 : i32
    %248 = tpu.dynamic_rotate %247 by %c96_i32_103 dim 1 : vector<8x128xf32>, i32 -> vector<8x128xf32>
    %c64_i32_104 = arith.constant 64 : i32
    %249 = tpu.dynamic_rotate %247 by %c64_i32_104 dim 1 : vector<8x128xf32>, i32 -> vector<8x128xf32>
    %c32_i32_105 = arith.constant 32 : i32
    %250 = tpu.dynamic_rotate %247 by %c32_i32_105 dim 1 : vector<8x128xf32>, i32 -> vector<8x128xf32>
    %251 = arith.mulf %248, %206 : vector<8x128xf32>
    %252 = arith.mulf %247, %249 : vector<8x128xf32>
    %253 = arith.addf %251, %252 : vector<8x128xf32>
    %254 = math.tanh %253 : vector<8x128xf32>
    %255 = arith.mulf %250, %254 : vector<8x128xf32>
    %c24_106 = arith.constant 24 : index
    %c0_107 = arith.constant 0 : index
    %256 = vector.load %arg7[%c24_106, %c0_107] : memref<64x128xf32, #tpu.memory_space<vmem>>, vector<8x128xf32>
    tpu.vector_store %arg7[%c24_106, %c0_107], %255 {strides = array<i32>} : memref<64x128xf32, #tpu.memory_space<vmem>>, vector<8x128xf32>,
    %c32_108 = arith.constant 32 : index
    %c0_109 = arith.constant 0 : index
    %257 = vector.load %arg8[%c32_108, %c0_109] : memref<64x128xf32, #tpu.memory_space<vmem>>, vector<8x128xf32>
    %cst_110 = arith.constant dense<0.000000e+00> : vector<8x128xf32>
    %258 = tpu.matmul %231, %64, %cst_110 {dimension_numbers = #tpu.dot_dimension_numbers<[1], [0], [0], [1], [0, 0, 1, 1], [], []>} : vector<8x128xf32>, vector<128x128xf32>, vector<8x128xf32> -> vector<8x128xf32>
    %259 = arith.addf %257, %258 : vector<8x128xf32>
    %260 = arith.addf %259, %259 : vector<8x128xf32>
    %261 = arith.select %63, %260, %259 : vector<8x128xi1>, vector<8x128xf32>
    %262 = arith.negf %261 : vector<8x128xf32>
    %263 = math.exp %262 : vector<8x128xf32>
    %cst_111 = arith.constant 1.000000e+00 : f32
    %264 = vector.broadcast %cst_111 : f32 to vector<8x128xf32>
    %265 = arith.addf %264, %263 : vector<8x128xf32>
    %266 = arith.divf %264, %265 : vector<8x128xf32>
    %267 = arith.addf %266, %266 : vector<8x128xf32>
    %cst_112 = arith.constant 1.000000e+00 : f32
    %268 = vector.broadcast %cst_112 : f32 to vector<8x128xf32>
    %269 = arith.subf %267, %268 : vector<8x128xf32>
    %270 = arith.select %63, %269, %266 : vector<8x128xi1>, vector<8x128xf32>
    %c96_i32_113 = arith.constant 96 : i32
    %271 = tpu.dynamic_rotate %270 by %c96_i32_113 dim 1 : vector<8x128xf32>, i32 -> vector<8x128xf32>
    %c64_i32_114 = arith.constant 64 : i32
    %272 = tpu.dynamic_rotate %270 by %c64_i32_114 dim 1 : vector<8x128xf32>, i32 -> vector<8x128xf32>
    %c32_i32_115 = arith.constant 32 : i32
    %273 = tpu.dynamic_rotate %270 by %c32_i32_115 dim 1 : vector<8x128xf32>, i32 -> vector<8x128xf32>
    %274 = arith.mulf %271, %229 : vector<8x128xf32>
    %275 = arith.mulf %270, %272 : vector<8x128xf32>
    %276 = arith.addf %274, %275 : vector<8x128xf32>
    %277 = math.tanh %276 : vector<8x128xf32>
    %278 = arith.mulf %273, %277 : vector<8x128xf32>
    %cst_116 = arith.constant dense<0.000000e+00> : vector<8x128xf32>
    %279 = tpu.matmul %278, %65, %cst_116 {dimension_numbers = #tpu.dot_dimension_numbers<[1], [0], [0], [1], [0, 0, 1, 1], [], []>} : vector<8x128xf32>, vector<128x128xf32>, vector<8x128xf32> -> vector<8x128xf32>
    %cst_117 = arith.constant dense<0.000000e+00> : vector<8x128xf32>
    %280 = tpu.matmul %255, %66, %cst_117 {dimension_numbers = #tpu.dot_dimension_numbers<[1], [0], [0], [1], [0, 0, 1, 1], [], []>} : vector<8x128xf32>, vector<128x128xf32>, vector<8x128xf32> -> vector<8x128xf32>
    %281 = arith.addf %279, %280 : vector<8x128xf32>
    %282 = vector.broadcast %67 : vector<1x128xf32> to vector<8x128xf32>
    %283 = arith.addf %281, %282 : vector<8x128xf32>
    %284 = arith.addf %283, %283 : vector<8x128xf32>
    %285 = arith.select %63, %284, %283 : vector<8x128xi1>, vector<8x128xf32>
    %286 = arith.negf %285 : vector<8x128xf32>
    %287 = math.exp %286 : vector<8x128xf32>
    %cst_118 = arith.constant 1.000000e+00 : f32
    %288 = vector.broadcast %cst_118 : f32 to vector<8x128xf32>
    %289 = arith.addf %288, %287 : vector<8x128xf32>
    %290 = arith.divf %288, %289 : vector<8x128xf32>
    %291 = arith.addf %290, %290 : vector<8x128xf32>
    %cst_119 = arith.constant 1.000000e+00 : f32
    %292 = vector.broadcast %cst_119 : f32 to vector<8x128xf32>
    %293 = arith.subf %291, %292 : vector<8x128xf32>
    %294 = arith.select %63, %293, %290 : vector<8x128xi1>, vector<8x128xf32>
    %c96_i32_120 = arith.constant 96 : i32
    %295 = tpu.dynamic_rotate %294 by %c96_i32_120 dim 1 : vector<8x128xf32>, i32 -> vector<8x128xf32>
    %c64_i32_121 = arith.constant 64 : i32
    %296 = tpu.dynamic_rotate %294 by %c64_i32_121 dim 1 : vector<8x128xf32>, i32 -> vector<8x128xf32>
    %c32_i32_122 = arith.constant 32 : i32
    %297 = tpu.dynamic_rotate %294 by %c32_i32_122 dim 1 : vector<8x128xf32>, i32 -> vector<8x128xf32>
    %298 = arith.mulf %295, %253 : vector<8x128xf32>
    %299 = arith.mulf %294, %296 : vector<8x128xf32>
    %300 = arith.addf %298, %299 : vector<8x128xf32>
    %301 = math.tanh %300 : vector<8x128xf32>
    %302 = arith.mulf %297, %301 : vector<8x128xf32>
    %c32_123 = arith.constant 32 : index
    %c0_124 = arith.constant 0 : index
    %303 = vector.load %arg7[%c32_123, %c0_124] : memref<64x128xf32, #tpu.memory_space<vmem>>, vector<8x128xf32>
    tpu.vector_store %arg7[%c32_123, %c0_124], %302 {strides = array<i32>} : memref<64x128xf32, #tpu.memory_space<vmem>>, vector<8x128xf32>,
    %c40_125 = arith.constant 40 : index
    %c0_126 = arith.constant 0 : index
    %304 = vector.load %arg8[%c40_125, %c0_126] : memref<64x128xf32, #tpu.memory_space<vmem>>, vector<8x128xf32>
    %cst_127 = arith.constant dense<0.000000e+00> : vector<8x128xf32>
    %305 = tpu.matmul %278, %64, %cst_127 {dimension_numbers = #tpu.dot_dimension_numbers<[1], [0], [0], [1], [0, 0, 1, 1], [], []>} : vector<8x128xf32>, vector<128x128xf32>, vector<8x128xf32> -> vector<8x128xf32>
    %306 = arith.addf %304, %305 : vector<8x128xf32>
    %307 = arith.addf %306, %306 : vector<8x128xf32>
    %308 = arith.select %63, %307, %306 : vector<8x128xi1>, vector<8x128xf32>
    %309 = arith.negf %308 : vector<8x128xf32>
    %310 = math.exp %309 : vector<8x128xf32>
    %cst_128 = arith.constant 1.000000e+00 : f32
    %311 = vector.broadcast %cst_128 : f32 to vector<8x128xf32>
    %312 = arith.addf %311, %310 : vector<8x128xf32>
    %313 = arith.divf %311, %312 : vector<8x128xf32>
    %314 = arith.addf %313, %313 : vector<8x128xf32>
    %cst_129 = arith.constant 1.000000e+00 : f32
    %315 = vector.broadcast %cst_129 : f32 to vector<8x128xf32>
    %316 = arith.subf %314, %315 : vector<8x128xf32>
    %317 = arith.select %63, %316, %313 : vector<8x128xi1>, vector<8x128xf32>
    %c96_i32_130 = arith.constant 96 : i32
    %318 = tpu.dynamic_rotate %317 by %c96_i32_130 dim 1 : vector<8x128xf32>, i32 -> vector<8x128xf32>
    %c64_i32_131 = arith.constant 64 : i32
    %319 = tpu.dynamic_rotate %317 by %c64_i32_131 dim 1 : vector<8x128xf32>, i32 -> vector<8x128xf32>
    %c32_i32_132 = arith.constant 32 : i32
    %320 = tpu.dynamic_rotate %317 by %c32_i32_132 dim 1 : vector<8x128xf32>, i32 -> vector<8x128xf32>
    %321 = arith.mulf %318, %276 : vector<8x128xf32>
    %322 = arith.mulf %317, %319 : vector<8x128xf32>
    %323 = arith.addf %321, %322 : vector<8x128xf32>
    %324 = math.tanh %323 : vector<8x128xf32>
    %325 = arith.mulf %320, %324 : vector<8x128xf32>
    %cst_133 = arith.constant dense<0.000000e+00> : vector<8x128xf32>
    %326 = tpu.matmul %325, %65, %cst_133 {dimension_numbers = #tpu.dot_dimension_numbers<[1], [0], [0], [1], [0, 0, 1, 1], [], []>} : vector<8x128xf32>, vector<128x128xf32>, vector<8x128xf32> -> vector<8x128xf32>
    %cst_134 = arith.constant dense<0.000000e+00> : vector<8x128xf32>
    %327 = tpu.matmul %302, %66, %cst_134 {dimension_numbers = #tpu.dot_dimension_numbers<[1], [0], [0], [1], [0, 0, 1, 1], [], []>} : vector<8x128xf32>, vector<128x128xf32>, vector<8x128xf32> -> vector<8x128xf32>
    %328 = arith.addf %326, %327 : vector<8x128xf32>
    %329 = vector.broadcast %67 : vector<1x128xf32> to vector<8x128xf32>
    %330 = arith.addf %328, %329 : vector<8x128xf32>
    %331 = arith.addf %330, %330 : vector<8x128xf32>
    %332 = arith.select %63, %331, %330 : vector<8x128xi1>, vector<8x128xf32>
    %333 = arith.negf %332 : vector<8x128xf32>
    %334 = math.exp %333 : vector<8x128xf32>
    %cst_135 = arith.constant 1.000000e+00 : f32
    %335 = vector.broadcast %cst_135 : f32 to vector<8x128xf32>
    %336 = arith.addf %335, %334 : vector<8x128xf32>
    %337 = arith.divf %335, %336 : vector<8x128xf32>
    %338 = arith.addf %337, %337 : vector<8x128xf32>
    %cst_136 = arith.constant 1.000000e+00 : f32
    %339 = vector.broadcast %cst_136 : f32 to vector<8x128xf32>
    %340 = arith.subf %338, %339 : vector<8x128xf32>
    %341 = arith.select %63, %340, %337 : vector<8x128xi1>, vector<8x128xf32>
    %c96_i32_137 = arith.constant 96 : i32
    %342 = tpu.dynamic_rotate %341 by %c96_i32_137 dim 1 : vector<8x128xf32>, i32 -> vector<8x128xf32>
    %c64_i32_138 = arith.constant 64 : i32
    %343 = tpu.dynamic_rotate %341 by %c64_i32_138 dim 1 : vector<8x128xf32>, i32 -> vector<8x128xf32>
    %c32_i32_139 = arith.constant 32 : i32
    %344 = tpu.dynamic_rotate %341 by %c32_i32_139 dim 1 : vector<8x128xf32>, i32 -> vector<8x128xf32>
    %345 = arith.mulf %342, %300 : vector<8x128xf32>
    %346 = arith.mulf %341, %343 : vector<8x128xf32>
    %347 = arith.addf %345, %346 : vector<8x128xf32>
    %348 = math.tanh %347 : vector<8x128xf32>
    %349 = arith.mulf %344, %348 : vector<8x128xf32>
    %c40_140 = arith.constant 40 : index
    %c0_141 = arith.constant 0 : index
    %350 = vector.load %arg7[%c40_140, %c0_141] : memref<64x128xf32, #tpu.memory_space<vmem>>, vector<8x128xf32>
    tpu.vector_store %arg7[%c40_140, %c0_141], %349 {strides = array<i32>} : memref<64x128xf32, #tpu.memory_space<vmem>>, vector<8x128xf32>,
    %c48_142 = arith.constant 48 : index
    %c0_143 = arith.constant 0 : index
    %351 = vector.load %arg8[%c48_142, %c0_143] : memref<64x128xf32, #tpu.memory_space<vmem>>, vector<8x128xf32>
    %cst_144 = arith.constant dense<0.000000e+00> : vector<8x128xf32>
    %352 = tpu.matmul %325, %64, %cst_144 {dimension_numbers = #tpu.dot_dimension_numbers<[1], [0], [0], [1], [0, 0, 1, 1], [], []>} : vector<8x128xf32>, vector<128x128xf32>, vector<8x128xf32> -> vector<8x128xf32>
    %353 = arith.addf %351, %352 : vector<8x128xf32>
    %354 = arith.addf %353, %353 : vector<8x128xf32>
    %355 = arith.select %63, %354, %353 : vector<8x128xi1>, vector<8x128xf32>
    %356 = arith.negf %355 : vector<8x128xf32>
    %357 = math.exp %356 : vector<8x128xf32>
    %cst_145 = arith.constant 1.000000e+00 : f32
    %358 = vector.broadcast %cst_145 : f32 to vector<8x128xf32>
    %359 = arith.addf %358, %357 : vector<8x128xf32>
    %360 = arith.divf %358, %359 : vector<8x128xf32>
    %361 = arith.addf %360, %360 : vector<8x128xf32>
    %cst_146 = arith.constant 1.000000e+00 : f32
    %362 = vector.broadcast %cst_146 : f32 to vector<8x128xf32>
    %363 = arith.subf %361, %362 : vector<8x128xf32>
    %364 = arith.select %63, %363, %360 : vector<8x128xi1>, vector<8x128xf32>
    %c96_i32_147 = arith.constant 96 : i32
    %365 = tpu.dynamic_rotate %364 by %c96_i32_147 dim 1 : vector<8x128xf32>, i32 -> vector<8x128xf32>
    %c64_i32_148 = arith.constant 64 : i32
    %366 = tpu.dynamic_rotate %364 by %c64_i32_148 dim 1 : vector<8x128xf32>, i32 -> vector<8x128xf32>
    %c32_i32_149 = arith.constant 32 : i32
    %367 = tpu.dynamic_rotate %364 by %c32_i32_149 dim 1 : vector<8x128xf32>, i32 -> vector<8x128xf32>
    %368 = arith.mulf %365, %323 : vector<8x128xf32>
    %369 = arith.mulf %364, %366 : vector<8x128xf32>
    %370 = arith.addf %368, %369 : vector<8x128xf32>
    %371 = math.tanh %370 : vector<8x128xf32>
    %372 = arith.mulf %367, %371 : vector<8x128xf32>
    %cst_150 = arith.constant dense<0.000000e+00> : vector<8x128xf32>
    %373 = tpu.matmul %372, %65, %cst_150 {dimension_numbers = #tpu.dot_dimension_numbers<[1], [0], [0], [1], [0, 0, 1, 1], [], []>} : vector<8x128xf32>, vector<128x128xf32>, vector<8x128xf32> -> vector<8x128xf32>
    %cst_151 = arith.constant dense<0.000000e+00> : vector<8x128xf32>
    %374 = tpu.matmul %349, %66, %cst_151 {dimension_numbers = #tpu.dot_dimension_numbers<[1], [0], [0], [1], [0, 0, 1, 1], [], []>} : vector<8x128xf32>, vector<128x128xf32>, vector<8x128xf32> -> vector<8x128xf32>
    %375 = arith.addf %373, %374 : vector<8x128xf32>
    %376 = vector.broadcast %67 : vector<1x128xf32> to vector<8x128xf32>
    %377 = arith.addf %375, %376 : vector<8x128xf32>
    %378 = arith.addf %377, %377 : vector<8x128xf32>
    %379 = arith.select %63, %378, %377 : vector<8x128xi1>, vector<8x128xf32>
    %380 = arith.negf %379 : vector<8x128xf32>
    %381 = math.exp %380 : vector<8x128xf32>
    %cst_152 = arith.constant 1.000000e+00 : f32
    %382 = vector.broadcast %cst_152 : f32 to vector<8x128xf32>
    %383 = arith.addf %382, %381 : vector<8x128xf32>
    %384 = arith.divf %382, %383 : vector<8x128xf32>
    %385 = arith.addf %384, %384 : vector<8x128xf32>
    %cst_153 = arith.constant 1.000000e+00 : f32
    %386 = vector.broadcast %cst_153 : f32 to vector<8x128xf32>
    %387 = arith.subf %385, %386 : vector<8x128xf32>
    %388 = arith.select %63, %387, %384 : vector<8x128xi1>, vector<8x128xf32>
    %c96_i32_154 = arith.constant 96 : i32
    %389 = tpu.dynamic_rotate %388 by %c96_i32_154 dim 1 : vector<8x128xf32>, i32 -> vector<8x128xf32>
    %c64_i32_155 = arith.constant 64 : i32
    %390 = tpu.dynamic_rotate %388 by %c64_i32_155 dim 1 : vector<8x128xf32>, i32 -> vector<8x128xf32>
    %c32_i32_156 = arith.constant 32 : i32
    %391 = tpu.dynamic_rotate %388 by %c32_i32_156 dim 1 : vector<8x128xf32>, i32 -> vector<8x128xf32>
    %392 = arith.mulf %389, %347 : vector<8x128xf32>
    %393 = arith.mulf %388, %390 : vector<8x128xf32>
    %394 = arith.addf %392, %393 : vector<8x128xf32>
    %395 = math.tanh %394 : vector<8x128xf32>
    %396 = arith.mulf %391, %395 : vector<8x128xf32>
    %c48_157 = arith.constant 48 : index
    %c0_158 = arith.constant 0 : index
    %397 = vector.load %arg7[%c48_157, %c0_158] : memref<64x128xf32, #tpu.memory_space<vmem>>, vector<8x128xf32>
    tpu.vector_store %arg7[%c48_157, %c0_158], %396 {strides = array<i32>} : memref<64x128xf32, #tpu.memory_space<vmem>>, vector<8x128xf32>,
    %c56_159 = arith.constant 56 : index
    %c0_160 = arith.constant 0 : index
    %398 = vector.load %arg8[%c56_159, %c0_160] : memref<64x128xf32, #tpu.memory_space<vmem>>, vector<8x128xf32>
    %cst_161 = arith.constant dense<0.000000e+00> : vector<8x128xf32>
    %399 = tpu.matmul %372, %64, %cst_161 {dimension_numbers = #tpu.dot_dimension_numbers<[1], [0], [0], [1], [0, 0, 1, 1], [], []>} : vector<8x128xf32>, vector<128x128xf32>, vector<8x128xf32> -> vector<8x128xf32>
    %400 = arith.addf %398, %399 : vector<8x128xf32>
    %401 = arith.addf %400, %400 : vector<8x128xf32>
    %402 = arith.select %63, %401, %400 : vector<8x128xi1>, vector<8x128xf32>
    %403 = arith.negf %402 : vector<8x128xf32>
    %404 = math.exp %403 : vector<8x128xf32>
    %cst_162 = arith.constant 1.000000e+00 : f32
    %405 = vector.broadcast %cst_162 : f32 to vector<8x128xf32>
    %406 = arith.addf %405, %404 : vector<8x128xf32>
    %407 = arith.divf %405, %406 : vector<8x128xf32>
    %408 = arith.addf %407, %407 : vector<8x128xf32>
    %cst_163 = arith.constant 1.000000e+00 : f32
    %409 = vector.broadcast %cst_163 : f32 to vector<8x128xf32>
    %410 = arith.subf %408, %409 : vector<8x128xf32>
    %411 = arith.select %63, %410, %407 : vector<8x128xi1>, vector<8x128xf32>
    %c96_i32_164 = arith.constant 96 : i32
    %412 = tpu.dynamic_rotate %411 by %c96_i32_164 dim 1 : vector<8x128xf32>, i32 -> vector<8x128xf32>
    %c64_i32_165 = arith.constant 64 : i32
    %413 = tpu.dynamic_rotate %411 by %c64_i32_165 dim 1 : vector<8x128xf32>, i32 -> vector<8x128xf32>
    %c32_i32_166 = arith.constant 32 : i32
    %414 = tpu.dynamic_rotate %411 by %c32_i32_166 dim 1 : vector<8x128xf32>, i32 -> vector<8x128xf32>
    %415 = arith.mulf %412, %370 : vector<8x128xf32>
    %416 = arith.mulf %411, %413 : vector<8x128xf32>
    %417 = arith.addf %415, %416 : vector<8x128xf32>
    %418 = math.tanh %417 : vector<8x128xf32>
    %419 = arith.mulf %414, %418 : vector<8x128xf32>
    %cst_167 = arith.constant dense<0.000000e+00> : vector<8x128xf32>
    %420 = tpu.matmul %419, %65, %cst_167 {dimension_numbers = #tpu.dot_dimension_numbers<[1], [0], [0], [1], [0, 0, 1, 1], [], []>} : vector<8x128xf32>, vector<128x128xf32>, vector<8x128xf32> -> vector<8x128xf32>
    %cst_168 = arith.constant dense<0.000000e+00> : vector<8x128xf32>
    %421 = tpu.matmul %396, %66, %cst_168 {dimension_numbers = #tpu.dot_dimension_numbers<[1], [0], [0], [1], [0, 0, 1, 1], [], []>} : vector<8x128xf32>, vector<128x128xf32>, vector<8x128xf32> -> vector<8x128xf32>
    %422 = arith.addf %420, %421 : vector<8x128xf32>
    %423 = vector.broadcast %67 : vector<1x128xf32> to vector<8x128xf32>
    %424 = arith.addf %422, %423 : vector<8x128xf32>
    %425 = arith.addf %424, %424 : vector<8x128xf32>
    %426 = arith.select %63, %425, %424 : vector<8x128xi1>, vector<8x128xf32>
    %427 = arith.negf %426 : vector<8x128xf32>
    %428 = math.exp %427 : vector<8x128xf32>
    %cst_169 = arith.constant 1.000000e+00 : f32
    %429 = vector.broadcast %cst_169 : f32 to vector<8x128xf32>
    %430 = arith.addf %429, %428 : vector<8x128xf32>
    %431 = arith.divf %429, %430 : vector<8x128xf32>
    %432 = arith.addf %431, %431 : vector<8x128xf32>
    %cst_170 = arith.constant 1.000000e+00 : f32
    %433 = vector.broadcast %cst_170 : f32 to vector<8x128xf32>
    %434 = arith.subf %432, %433 : vector<8x128xf32>
    %435 = arith.select %63, %434, %431 : vector<8x128xi1>, vector<8x128xf32>
    %c96_i32_171 = arith.constant 96 : i32
    %436 = tpu.dynamic_rotate %435 by %c96_i32_171 dim 1 : vector<8x128xf32>, i32 -> vector<8x128xf32>
    %c64_i32_172 = arith.constant 64 : i32
    %437 = tpu.dynamic_rotate %435 by %c64_i32_172 dim 1 : vector<8x128xf32>, i32 -> vector<8x128xf32>
    %c32_i32_173 = arith.constant 32 : i32
    %438 = tpu.dynamic_rotate %435 by %c32_i32_173 dim 1 : vector<8x128xf32>, i32 -> vector<8x128xf32>
    %439 = arith.mulf %436, %394 : vector<8x128xf32>
    %440 = arith.mulf %435, %437 : vector<8x128xf32>
    %441 = arith.addf %439, %440 : vector<8x128xf32>
    %442 = math.tanh %441 : vector<8x128xf32>
    %443 = arith.mulf %438, %442 : vector<8x128xf32>
    %c56_174 = arith.constant 56 : index
    %c0_175 = arith.constant 0 : index
    %444 = vector.load %arg7[%c56_174, %c0_175] : memref<64x128xf32, #tpu.memory_space<vmem>>, vector<8x128xf32>
    tpu.vector_store %arg7[%c56_174, %c0_175], %443 {strides = array<i32>} : memref<64x128xf32, #tpu.memory_space<vmem>>, vector<8x128xf32>,
    %c0_176 = arith.constant 0 : index
    %c0_177 = arith.constant 0 : index
    %445 = vector.load %arg4[%c0_176, %c0_177] : memref<64x16xf32, #tpu.memory_space<vmem>>, vector<64x16xf32>
    %c1168 = arith.constant 1168 : index
    %c0_178 = arith.constant 0 : index
    %446 = vector.load %arg5[%c1168, %c0_178] : memref<1192x128xf32, #tpu.memory_space<vmem>>, vector<16x128xf32>
    %cst_179 = arith.constant dense<0.000000e+00> : vector<64x128xf32>
    %447 = tpu.matmul %445, %446, %cst_179 {dimension_numbers = #tpu.dot_dimension_numbers<[1], [0], [0], [1], [0, 0, 1, 1], [], []>} : vector<64x16xf32>, vector<16x128xf32>, vector<64x128xf32> -> vector<64x128xf32>
    %c0_180 = arith.constant 0 : index
    %c0_181 = arith.constant 0 : index
    %448 = vector.load %arg7[%c0_180, %c0_181] : memref<64x128xf32, #tpu.memory_space<vmem>>, vector<64x128xf32>
    %449 = arith.mulf %448, %447 : vector<64x128xf32>
    %c896 = arith.constant 896 : index
    %c0_182 = arith.constant 0 : index
    %450 = vector.load %arg5[%c896, %c0_182] : memref<1192x128xf32, #tpu.memory_space<vmem>>, vector<128x128xf32>
    %cst_183 = arith.constant dense<0.000000e+00> : vector<64x128xf32>
    %451 = tpu.matmul %449, %450, %cst_183 {dimension_numbers = #tpu.dot_dimension_numbers<[1], [0], [0], [1], [0, 0, 1, 1], [], []>} : vector<64x128xf32>, vector<128x128xf32>, vector<64x128xf32> -> vector<64x128xf32>
    %c1189 = arith.constant 1189 : index
    %c0_184 = arith.constant 0 : index
    %452 = vector.load %arg5[%c1189, %c0_184] : memref<1192x128xf32, #tpu.memory_space<vmem>>, vector<1x128xf32>
    %453 = vector.broadcast %452 : vector<1x128xf32> to vector<64x128xf32>
    %454 = arith.addf %451, %453 : vector<64x128xf32>
    %cst_185 = arith.constant 0.000000e+00 : f32
    %455 = vector.broadcast %cst_185 : f32 to vector<64x128xf32>
    %456 = arith.maximumf %454, %455 : vector<64x128xf32>
    %c1024 = arith.constant 1024 : index
    %c0_186 = arith.constant 0 : index
    %457 = vector.load %arg5[%c1024, %c0_186] : memref<1192x128xf32, #tpu.memory_space<vmem>>, vector<128x128xf32>
    %cst_187 = arith.constant dense<0.000000e+00> : vector<64x128xf32>
    %458 = tpu.matmul %456, %457, %cst_187 {dimension_numbers = #tpu.dot_dimension_numbers<[1], [0], [0], [1], [0, 0, 1, 1], [], []>} : vector<64x128xf32>, vector<128x128xf32>, vector<64x128xf32> -> vector<64x128xf32>
    %c1190 = arith.constant 1190 : index
    %c0_188 = arith.constant 0 : index
    %459 = vector.load %arg5[%c1190, %c0_188] : memref<1192x128xf32, #tpu.memory_space<vmem>>, vector<1x128xf32>
    %460 = vector.broadcast %459 : vector<1x128xf32> to vector<64x128xf32>
    %461 = arith.addf %458, %460 : vector<64x128xf32>
    %c0_189 = arith.constant 0 : index
    %c0_190 = arith.constant 0 : index
    %462 = vector.load %arg6[%c0_189, %c0_190] : memref<64x128xf32, #tpu.memory_space<vmem>>, vector<64x128xf32>
    tpu.vector_store %arg6[%c0_189, %c0_190], %461 {strides = array<i32>} : memref<64x128xf32, #tpu.memory_space<vmem>>, vector<64x128xf32>,
    return
  }
  func.func @transform_0(%arg0: i32) -> (i32, i32) {
    %c0_i32 = arith.constant 0 : i32
    %c0_i32_0 = arith.constant 0 : i32
    %c0_i32_1 = arith.constant 0 : i32
    return %c0_i32, %c0_i32_0 : i32, i32
  }
  func.func @transform_1(%arg0: i32) -> (i32, i32) {
    %c0_i32 = arith.constant 0 : i32
    %c0_i32_0 = arith.constant 0 : i32
    %c0_i32_1 = arith.constant 0 : i32
    return %c0_i32, %c0_i32_0 : i32, i32
  }
  func.func @transform_2(%arg0: i32) -> (i32, i32) {
    %c0_i32 = arith.constant 0 : i32
    %c0_i32_0 = arith.constant 0 : i32
    %c0_i32_1 = arith.constant 0 : i32
    return %c0_i32, %c0_i32_0 : i32, i32
  }
  func.func @transform_3(%arg0: i32) -> (i32, i32) {
    %c0_i32 = arith.constant 0 : i32
    %c0_i32_0 = arith.constant 0 : i32
    %c0_i32_1 = arith.constant 0 : i32
    return %c0_i32, %c0_i32_0 : i32, i32
  }
  func.func @transform_4(%arg0: i32) -> (i32, i32) {
    %c0_i32 = arith.constant 0 : i32
    %c0_i32_0 = arith.constant 0 : i32
    %c0_i32_1 = arith.constant 0 : i32
    return %c0_i32, %c0_i32_0 : i32, i32
  }
  func.func @transform_5(%arg0: i32) -> (i32, i32) {
    %c0_i32 = arith.constant 0 : i32
    %c0_i32_0 = arith.constant 0 : i32
    %c0_i32_1 = arith.constant 0 : i32
    return %c0_i32, %c0_i32_0 : i32, i32
  }
}

</mosaic_0001>

<llo_original>
// kernel: gcn_lstm_forward.1
$region0: #{gcn_lstm_forward.1}
  #allocation0 [shape = 'u32[]', space=smem, size = 0x4, offset = 0x4, fixed_abs, tag = 'smem constant byte address 0x4 - core index']
  #allocation1 [shape = 'u32[72,128]{1,0:T(1,128)}', space=vmem, size = 0x9000, scoped, tag = 'internal scratch']
  #allocation2 [shape = 'f32[64,128]{1,0:T(8,128)}', space=vmem, size = 0x8000, scoped, tag = 'scratch operand']
  #allocation3 [shape = 'f32[64,128]{1,0:T(8,128)}', space=vmem, size = 0x8000, scoped, tag = 'scratch operand']
  %s0 = inlined_call_operand.vmem [shape: f32[16,16], index: 0, kind: input, shape index: {}]
  %s1 = inlined_call_operand.vmem [shape: f32[16,128], index: 1, kind: input, shape index: {}]
  %s2 = inlined_call_operand.vmem [shape: f32[8,16], index: 2, kind: input, shape index: {}]
  %s3 = inlined_call_operand.vmem [shape: f32[64,16], index: 3, kind: input, shape index: {}]
  %s4 = inlined_call_operand.hbm [shape: f32[1192,128], index: 4, kind: input, shape index: {}]
  %s5 = inlined_call_operand.vmem [shape: f32[64,128], index: 5, kind: output, shape index: {}]
  %s6 = sld [smem:[#allocation0]]
  $region34: #{gcn_lstm_forward.1} parent=0
    _
  %s8 = ssub.s32 1, %s6
  %s9 = scalar_select 0, %s8, %s6
  $region1: #{gcn_lstm_forward.1} parent=0
    #allocation4 [shape = 'u8[610304]{0}', space=vmem, size = 0x95000, scoped, tag = 'input window, operand 4, single buffered']
    #allocation5 [shape = 's32[1]{0}', space=sflag, size = 0x4, scoped, tag = 'scoped memory for gcn_lstm_forward.1']
    %10 = vsyncpa [#allocation5], 0
    // Predicated region
    $region2: #{gcn_lstm_forward.1} parent=1 // pred_check
      _
    $region3: #{gcn_lstm_forward.1} parent=1 // pred_check_branch
      %12 = sbr.rel (0) target = $region5
    $region4: #{gcn_lstm_forward.1} parent=1 // pred_region
      _
    $region5: #{gcn_lstm_forward.1} parent=1 // pred_fallthru
      _
    // Predicated region
    $region6: #{gcn_lstm_forward.1} parent=1 // pred_check
      _
    $region7: #{gcn_lstm_forward.1} parent=1 // pred_check_branch
      %14 = sbr.rel (0) target = $region9
    $region8: #{gcn_lstm_forward.1} parent=1 // pred_region
      _
    $region9: #{gcn_lstm_forward.1} parent=1 // pred_fallthru
      _
    // Predicated region
    $region10: #{gcn_lstm_forward.1} parent=1 // pred_check
      _
    $region11: #{gcn_lstm_forward.1} parent=1 // pred_check_branch
      %16 = sbr.rel (0) target = $region13
    $region12: #{gcn_lstm_forward.1} parent=1 // pred_region
      _
    $region13: #{gcn_lstm_forward.1} parent=1 // pred_fallthru
      _
    // Predicated region
    $region14: #{gcn_lstm_forward.1} parent=1 // pred_check
      _
    $region15: #{gcn_lstm_forward.1} parent=1 // pred_check_branch
      %18 = sbr.rel (0) target = $region17
    $region16: #{gcn_lstm_forward.1} parent=1 // pred_region
      _
    $region17: #{gcn_lstm_forward.1} parent=1 // pred_fallthru
      _
    // Predicated region
    $region18: #{gcn_lstm_forward.1} parent=1 // pred_check
      _
    $region19: #{gcn_lstm_forward.1} parent=1 // pred_check_branch
      %20 = sbr.rel (0) target = $region21
    $region20: #{gcn_lstm_forward.1} parent=1 // pred_region
      %22 = vsyncadd [#allocation5], 0
      %s23 = sshll.u32 %s4, 4
      %s24 = int_to_ptr.hbm [resolvable:$true] %s23
      %s25 = sshll.u32 [#allocation4], 4
      %s26 = int_to_ptr.vmem [resolvable:$true] %s25
      %31 = dma.hbm_to_vmem [thread:$0]  %s24, 19072, %s26, [#allocation5], 128, 128, 8
    $region21: #{gcn_lstm_forward.1} parent=1 // pred_fallthru
      _
    // Predicated region
    $region22: #{gcn_lstm_forward.1} parent=1 // pred_check
      _
    $region23: #{gcn_lstm_forward.1} parent=1 // pred_check_branch
      %33 = sbr.rel (0) target = $region25
    $region24: #{gcn_lstm_forward.1} parent=1 // pred_region
      %35 = dma.done [#allocation5], 19072
    $region25: #{gcn_lstm_forward.1} parent=1 // pred_fallthru
      _
    %v36 = vld [vmem:[%s0] sm:$0xff]
    %v37 = vld [vmem:[%s0 + $0x8] sm:$0xff]
    %v38 = vld [vmem:[%s1] sm:$0xff]
    %v39 = vld [vmem:[%s1 + $0x8] sm:$0xff]
    %vm40 = vcmask 130048
    %v42 = vsel %vm40, %v36, 0
    %v45 = vsel %vm40, %v37, 0
    %47 = vmatpush.msra.mxu0 0.0
    %48 = vmatpush.msra.mxu0 0.0
    %49 = vmatpush.msra.mxu0 0.0
    %50 = vmatpush.msra.mxu0 0.0
    %51 = vmatpush.msra.mxu0 0.0
    %52 = vmatpush.msra.mxu0 0.0
    %53 = vmatpush.msra.mxu0 0.0
    %54 = vmatpush.msra.mxu0 0.0
    %55 = vmatpush.msra.mxu0 0.0
    %56 = vmatpush.msra.mxu0 0.0
    %57 = vmatpush.msra.mxu0 0.0
    %58 = vmatpush.msra.mxu0 0.0
    %59 = vmatpush.msra.mxu0 0.0
    %60 = vmatpush.msra.mxu0 0.0
    %61 = vmatpush.msra.mxu0 %v39
    %62 = vmatpush.msra.mxu0 %v38
    %63 = vmatmul.f32.gmra.mxu0 %v42
    %v64 = vpop.f32.mrf.mxu0
    %v65 = vadd.f32 0.0, %v64
    %66 = vmatmul.f32.gmra.mxu0 %v45
    %v67 = vpop.f32.mrf.mxu0
    %v68 = vadd.f32 0.0, %v67
    %69 = vdwg.mxu0
    %v70 = vld [vmem:[#allocation4] sm:$0xff]
    %v71 = vld [vmem:[#allocation4 + $0x8] sm:$0xff]
    %v72 = vld [vmem:[#allocation4 + $0x10] sm:$0xff]
    %v73 = vld [vmem:[#allocation4 + $0x18] sm:$0xff]
    %v74 = vld [vmem:[#allocation4 + $0x20] sm:$0xff]
    %v75 = vld [vmem:[#allocation4 + $0x28] sm:$0xff]
    %v76 = vld [vmem:[#allocation4 + $0x30] sm:$0xff]
    %v77 = vld [vmem:[#allocation4 + $0x38] sm:$0xff]
    %v78 = vld [vmem:[#allocation4 + $0x40] sm:$0xff]
    %v79 = vld [vmem:[#allocation4 + $0x48] sm:$0xff]
    %v80 = vld [vmem:[#allocation4 + $0x50] sm:$0xff]
    %v81 = vld [vmem:[#allocation4 + $0x58] sm:$0xff]
    %v82 = vld [vmem:[#allocation4 + $0x60] sm:$0xff]
    %v83 = vld [vmem:[#allocation4 + $0x68] sm:$0xff]
    %v84 = vld [vmem:[#allocation4 + $0x70] sm:$0xff]
    %v85 = vld [vmem:[#allocation4 + $0x78] sm:$0xff]
    %v86 = vld [vmem:[#allocation4 + $0x4a0] sm:$0x1]
    %v87 = vperm.slane %v86, 0
    %88 = vmatpush.msra.mxu0 %v85
    %89 = vmatpush.msra.mxu0 %v84
    %90 = vmatpush.msra.mxu0 %v83
    %91 = vmatpush.msra.mxu0 %v82
    %92 = vmatpush.msra.mxu0 %v81
    %93 = vmatpush.msra.mxu0 %v80
    %94 = vmatpush.msra.mxu0 %v79
    %95 = vmatpush.msra.mxu0 %v78
    %96 = vmatpush.msra.mxu0 %v77
    %97 = vmatpush.msra.mxu0 %v76
    %98 = vmatpush.msra.mxu0 %v75
    %99 = vmatpush.msra.mxu0 %v74
    %100 = vmatpush.msra.mxu0 %v73
    %101 = vmatpush.msra.mxu0 %v72
    %102 = vmatpush.msra.mxu0 %v71
    %103 = vmatpush.msra.mxu0 %v70
    %104 = vmatmul.f32.gmra.mxu0 %v65
    %v105 = vpop.f32.mrf.mxu0
    %v106 = vadd.f32 %v87, %v105
    %107 = vmatmul.f32.gmra.mxu0 %v68
    %v108 = vpop.f32.mrf.mxu0
    %v109 = vadd.f32 %v87, %v108
    %110 = vdwg.mxu0
    %v111 = vmax.f32 %v106, 0.0
    %v112 = vmax.f32 %v109, 0.0
    %113 = vmatpush.msra.mxu0 0.0
    %114 = vmatpush.msra.mxu0 0.0
    %115 = vmatpush.msra.mxu0 0.0
    %116 = vmatpush.msra.mxu0 0.0
    %117 = vmatpush.msra.mxu0 0.0
    %118 = vmatpush.msra.mxu0 0.0
    %119 = vmatpush.msra.mxu0 0.0
    %120 = vmatpush.msra.mxu0 0.0
    %121 = vmatpush.msra.mxu0 0.0
    %122 = vmatpush.msra.mxu0 0.0
    %123 = vmatpush.msra.mxu0 0.0
    %124 = vmatpush.msra.mxu0 0.0
    %125 = vmatpush.msra.mxu0 0.0
    %126 = vmatpush.msra.mxu0 0.0
    %127 = vmatpush.msra.mxu0 %v112
    %128 = vmatpush.msra.mxu0 %v111
    %129 = vmatmul.f32.gmra.mxu0 %v42
    %v130 = vpop.f32.mrf.mxu0
    %v131 = vadd.f32 0.0, %v130
    %132 = vmatmul.f32.gmra.mxu0 %v45
    %v133 = vpop.f32.mrf.mxu0
    %v134 = vadd.f32 0.0, %v133
    %135 = vdwg.mxu0
    %v136 = vld [vmem:[#allocation4 + $0x80] sm:$0xff]
    %v137 = vld [vmem:[#allocation4 + $0x88] sm:$0xff]
    %v138 = vld [vmem:[#allocation4 + $0x90] sm:$0xff]
    %v139 = vld [vmem:[#allocation4 + $0x98] sm:$0xff]
    %v140 = vld [vmem:[#allocation4 + $0xa0] sm:$0xff]
    %v141 = vld [vmem:[#allocation4 + $0xa8] sm:$0xff]
    %v142 = vld [vmem:[#allocation4 + $0xb0] sm:$0xff]
    %v143 = vld [vmem:[#allocation4 + $0xb8] sm:$0xff]
    %v144 = vld [vmem:[#allocation4 + $0xc0] sm:$0xff]
    %v145 = vld [vmem:[#allocation4 + $0xc8] sm:$0xff]
    %v146 = vld [vmem:[#allocation4 + $0xd0] sm:$0xff]
    %v147 = vld [vmem:[#allocation4 + $0xd8] sm:$0xff]
    %v148 = vld [vmem:[#allocation4 + $0xe0] sm:$0xff]
    %v149 = vld [vmem:[#allocation4 + $0xe8] sm:$0xff]
    %v150 = vld [vmem:[#allocation4 + $0xf0] sm:$0xff]
    %v151 = vld [vmem:[#allocation4 + $0xf8] sm:$0xff]
    %v152 = vld [vmem:[#allocation4 + $0x4a1] sm:$0x1]
    %v153 = vperm.slane %v152, 0
    %154 = vmatpush.msra.mxu0 %v151
    %155 = vmatpush.msra.mxu0 %v150
    %156 = vmatpush.msra.mxu0 %v149
    %157 = vmatpush.msra.mxu0 %v148
    %158 = vmatpush.msra.mxu0 %v147
    %159 = vmatpush.msra.mxu0 %v146
    %160 = vmatpush.msra.mxu0 %v145
    %161 = vmatpush.msra.mxu0 %v144
    %162 = vmatpush.msra.mxu0 %v143
    %163 = vmatpush.msra.mxu0 %v142
    %164 = vmatpush.msra.mxu0 %v141
    %165 = vmatpush.msra.mxu0 %v140
    %166 = vmatpush.msra.mxu0 %v139
    %167 = vmatpush.msra.mxu0 %v138
    %168 = vmatpush.msra.mxu0 %v137
    %169 = vmatpush.msra.mxu0 %v136
    %170 = vmatmul.f32.gmra.mxu0 %v131
    %v171 = vpop.f32.mrf.mxu0
    %v172 = vadd.f32 %v153, %v171
    %173 = vmatmul.f32.gmra.mxu0 %v134
    %v174 = vpop.f32.mrf.mxu0
    %v175 = vadd.f32 %v153, %v174
    %176 = vdwg.mxu0
    %v177 = vmax.f32 %v172, 0.0
    %v178 = vmax.f32 %v175, 0.0
    %179 = vmatpush.msra.mxu0 0.0
    %180 = vmatpush.msra.mxu0 0.0
    %181 = vmatpush.msra.mxu0 0.0
    %182 = vmatpush.msra.mxu0 0.0
    %183 = vmatpush.msra.mxu0 0.0
    %184 = vmatpush.msra.mxu0 0.0
    %185 = vmatpush.msra.mxu0 0.0
    %186 = vmatpush.msra.mxu0 0.0
    %187 = vmatpush.msra.mxu0 0.0
    %188 = vmatpush.msra.mxu0 0.0
    %189 = vmatpush.msra.mxu0 0.0
    %190 = vmatpush.msra.mxu0 0.0
    %191 = vmatpush.msra.mxu0 0.0
    %192 = vmatpush.msra.mxu0 0.0
    %193 = vmatpush.msra.mxu0 %v178
    %194 = vmatpush.msra.mxu0 %v177
    %195 = vmatmul.f32.gmra.mxu0 %v42
    %v196 = vpop.f32.mrf.mxu0
    %v197 = vadd.f32 0.0, %v196
    %198 = vmatmul.f32.gmra.mxu0 %v45
    %v199 = vpop.f32.mrf.mxu0
    %v200 = vadd.f32 0.0, %v199
    %201 = vdwg.mxu0
    %v202 = vld [vmem:[#allocation4 + $0x100] sm:$0xff]
    %v203 = vld [vmem:[#allocation4 + $0x108] sm:$0xff]
    %v204 = vld [vmem:[#allocation4 + $0x110] sm:$0xff]
    %v205 = vld [vmem:[#allocation4 + $0x118] sm:$0xff]
    %v206 = vld [vmem:[#allocation4 + $0x120] sm:$0xff]
    %v207 = vld [vmem:[#allocation4 + $0x128] sm:$0xff]
    %v208 = vld [vmem:[#allocation4 + $0x130] sm:$0xff]
    %v209 = vld [vmem:[#allocation4 + $0x138] sm:$0xff]
    %v210 = vld [vmem:[#allocation4 + $0x140] sm:$0xff]
    %v211 = vld [vmem:[#allocation4 + $0x148] sm:$0xff]
    %v212 = vld [vmem:[#allocation4 + $0x150] sm:$0xff]
    %v213 = vld [vmem:[#allocation4 + $0x158] sm:$0xff]
    %v214 = vld [vmem:[#allocation4 + $0x160] sm:$0xff]
    %v215 = vld [vmem:[#allocation4 + $0x168] sm:$0xff]
    %v216 = vld [vmem:[#allocation4 + $0x170] sm:$0xff]
    %v217 = vld [vmem:[#allocation4 + $0x178] sm:$0xff]
    %v218 = vld [vmem:[#allocation4 + $0x4a2] sm:$0x1]
    %v219 = vperm.slane %v218, 0
    %220 = vmatpush.msra.mxu0 %v217
    %221 = vmatpush.msra.mxu0 %v216
    %222 = vmatpush.msra.mxu0 %v215
    %223 = vmatpush.msra.mxu0 %v214
    %224 = vmatpush.msra.mxu0 %v213
    %225 = vmatpush.msra.mxu0 %v212
    %226 = vmatpush.msra.mxu0 %v211
    %227 = vmatpush.msra.mxu0 %v210
    %228 = vmatpush.msra.mxu0 %v209
    %229 = vmatpush.msra.mxu0 %v208
    %230 = vmatpush.msra.mxu0 %v207
    %231 = vmatpush.msra.mxu0 %v206
    %232 = vmatpush.msra.mxu0 %v205
    %233 = vmatpush.msra.mxu0 %v204
    %234 = vmatpush.msra.mxu0 %v203
    %235 = vmatpush.msra.mxu0 %v202
    %236 = vmatmul.f32.gmra.mxu0 %v197
    %v237 = vpop.f32.mrf.mxu0
    %v238 = vadd.f32 %v219, %v237
    %239 = vmatmul.f32.gmra.mxu0 %v200
    %v240 = vpop.f32.mrf.mxu0
    %v241 = vadd.f32 %v219, %v240
    %242 = vdwg.mxu0
    %v243 = vld [vmem:[%s2] sm:$0xff]
    %v245 = vsel %vm40, %v243, 0
    %247 = vmatpush.msra.mxu0 0.0
    %248 = vmatpush.msra.mxu0 0.0
    %249 = vmatpush.msra.mxu0 0.0
    %250 = vmatpush.msra.mxu0 0.0
    %251 = vmatpush.msra.mxu0 0.0
    %252 = vmatpush.msra.mxu0 0.0
    %253 = vmatpush.msra.mxu0 0.0
    %254 = vmatpush.msra.mxu0 0.0
    %255 = vmatpush.msra.mxu0 0.0
    %256 = vmatpush.msra.mxu0 0.0
    %257 = vmatpush.msra.mxu0 0.0
    %258 = vmatpush.msra.mxu0 0.0
    %259 = vmatpush.msra.mxu0 0.0
    %260 = vmatpush.msra.mxu0 0.0
    %261 = vmatpush.msra.mxu0 %v241
    %262 = vmatpush.msra.mxu0 %v238
    %263 = vmatmul.f32.gmra.mxu0 %v245
    %v264 = vpop.f32.mrf.mxu0
    %v265 = vadd.f32 0.0, %v264
    %266 = vdwg.mxu0
    %v267 = vld [vmem:[#allocation4 + $0x180] sm:$0xff]
    %v268 = vld [vmem:[#allocation4 + $0x188] sm:$0xff]
    %v269 = vld [vmem:[#allocation4 + $0x190] sm:$0xff]
    %v270 = vld [vmem:[#allocation4 + $0x198] sm:$0xff]
    %v271 = vld [vmem:[#allocation4 + $0x1a0] sm:$0xff]
    %v272 = vld [vmem:[#allocation4 + $0x1a8] sm:$0xff]
    %v273 = vld [vmem:[#allocation4 + $0x1b0] sm:$0xff]
    %v274 = vld [vmem:[#allocation4 + $0x1b8] sm:$0xff]
    %v275 = vld [vmem:[#allocation4 + $0x1c0] sm:$0xff]
    %v276 = vld [vmem:[#allocation4 + $0x1c8] sm:$0xff]
    %v277 = vld [vmem:[#allocation4 + $0x1d0] sm:$0xff]
    %v278 = vld [vmem:[#allocation4 + $0x1d8] sm:$0xff]
    %v279 = vld [vmem:[#allocation4 + $0x1e0] sm:$0xff]
    %v280 = vld [vmem:[#allocation4 + $0x1e8] sm:$0xff]
    %v281 = vld [vmem:[#allocation4 + $0x1f0] sm:$0xff]
    %v282 = vld [vmem:[#allocation4 + $0x1f8] sm:$0xff]
    %v283 = vld [vmem:[#allocation4 + $0x4a3] sm:$0x1]
    %v284 = vperm.slane %v283, 0
    %285 = vmatpush.msra.mxu0 %v282
    %286 = vmatpush.msra.mxu0 %v281
    %287 = vmatpush.msra.mxu0 %v280
    %288 = vmatpush.msra.mxu0 %v279
    %289 = vmatpush.msra.mxu0 %v278
    %290 = vmatpush.msra.mxu0 %v277
    %291 = vmatpush.msra.mxu0 %v276
    %292 = vmatpush.msra.mxu0 %v275
    %293 = vmatpush.msra.mxu0 %v274
    %294 = vmatpush.msra.mxu0 %v273
    %295 = vmatpush.msra.mxu0 %v272
    %296 = vmatpush.msra.mxu0 %v271
    %297 = vmatpush.msra.mxu0 %v270
    %298 = vmatpush.msra.mxu0 %v269
    %299 = vmatpush.msra.mxu0 %v268
    %300 = vmatpush.msra.mxu0 %v267
    %301 = vmatmul.f32.gmra.mxu0 %v265
    %v302 = vpop.f32.mrf.mxu0
    %v303 = vadd.f32 %v284, %v302
    %304 = vdwg.mxu0
    %v305 = vld [vmem:[%s3] sm:$0xff]
    %v306 = vld [vmem:[%s3 + $0x8] sm:$0xff]
    %v307 = vld [vmem:[%s3 + $0x10] sm:$0xff]
    %v308 = vld [vmem:[%s3 + $0x18] sm:$0xff]
    %v309 = vld [vmem:[%s3 + $0x20] sm:$0xff]
    %v310 = vld [vmem:[%s3 + $0x28] sm:$0xff]
    %v311 = vld [vmem:[%s3 + $0x30] sm:$0xff]
    %v312 = vld [vmem:[%s3 + $0x38] sm:$0xff]
    %v313 = vld [vmem:[#allocation4 + $0x480] sm:$0xff]
    %v314 = vld [vmem:[#allocation4 + $0x488] sm:$0xff]
    %v316 = vsel %vm40, %v305, 0
    %v319 = vsel %vm40, %v306, 0
    %v322 = vsel %vm40, %v307, 0
    %v325 = vsel %vm40, %v308, 0
    %v328 = vsel %vm40, %v309, 0
    %v331 = vsel %vm40, %v310, 0
    %v334 = vsel %vm40, %v311, 0
    %v337 = vsel %vm40, %v312, 0
    %339 = vmatpush.msra.mxu0 0.0
    %340 = vmatpush.msra.mxu0 0.0
    %341 = vmatpush.msra.mxu0 0.0
    %342 = vmatpush.msra.mxu0 0.0
    %343 = vmatpush.msra.mxu0 0.0
    %344 = vmatpush.msra.mxu0 0.0
    %345 = vmatpush.msra.mxu0 0.0
    %346 = vmatpush.msra.mxu0 0.0
    %347 = vmatpush.msra.mxu0 0.0
    %348 = vmatpush.msra.mxu0 0.0
    %349 = vmatpush.msra.mxu0 0.0
    %350 = vmatpush.msra.mxu0 0.0
    %351 = vmatpush.msra.mxu0 0.0
    %352 = vmatpush.msra.mxu0 0.0
    %353 = vmatpush.msra.mxu0 %v314
    %354 = vmatpush.msra.mxu0 %v313
    %355 = vmatmul.f32.gmra.mxu0 %v316
    %v356 = vpop.f32.mrf.mxu0
    %v357 = vadd.f32 0.0, %v356
    %358 = vmatmul.f32.gmra.mxu0 %v319
    %v359 = vpop.f32.mrf.mxu0
    %v360 = vadd.f32 0.0, %v359
    %361 = vmatmul.f32.gmra.mxu0 %v322
    %v362 = vpop.f32.mrf.mxu0
    %v363 = vadd.f32 0.0, %v362
    %364 = vmatmul.f32.gmra.mxu0 %v325
    %v365 = vpop.f32.mrf.mxu0
    %v366 = vadd.f32 0.0, %v365
    %367 = vmatmul.f32.gmra.mxu0 %v328
    %v368 = vpop.f32.mrf.mxu0
    %v369 = vadd.f32 0.0, %v368
    %370 = vmatmul.f32.gmra.mxu0 %v331
    %v371 = vpop.f32.mrf.mxu0
    %v372 = vadd.f32 0.0, %v371
    %373 = vmatmul.f32.gmra.mxu0 %v334
    %v374 = vpop.f32.mrf.mxu0
    %v375 = vadd.f32 0.0, %v374
    %376 = vmatmul.f32.gmra.mxu0 %v337
    %v377 = vpop.f32.mrf.mxu0
    %v378 = vadd.f32 0.0, %v377
    %379 = vdwg.mxu0
    %v380 = vadd.f32 %v357, %v303
    %381 = vst [vmem:[#allocation3] sm:$0xff] %v380
    %v382 = vadd.f32 %v360, %v303
    %383 = vst [vmem:[#allocation3 + $0x8] sm:$0xff] %v382
    %v384 = vadd.f32 %v363, %v303
    %385 = vst [vmem:[#allocation3 + $0x10] sm:$0xff] %v384
    %v386 = vadd.f32 %v366, %v303
    %387 = vst [vmem:[#allocation3 + $0x18] sm:$0xff] %v386
    %v388 = vadd.f32 %v369, %v303
    %389 = vst [vmem:[#allocation3 + $0x20] sm:$0xff] %v388
    %v390 = vadd.f32 %v372, %v303
    %391 = vst [vmem:[#allocation3 + $0x28] sm:$0xff] %v390
    %v392 = vadd.f32 %v375, %v303
    %393 = vst [vmem:[#allocation3 + $0x30] sm:$0xff] %v392
    %v394 = vadd.f32 %v378, %v303
    %395 = vst [vmem:[#allocation3 + $0x38] sm:$0xff] %v394
    %v396 = vlaneseq
    %v397 = vand.u32 %v396, 127
    %vm398 = vcmp.ge.s32.totalorder %v397, 64
    %vm399 = vcmp.lt.s32.totalorder %v397, 96
    %vm400 = vmand %vm398, %vm399
    %v401 = vld [vmem:[#allocation4 + $0x200] sm:$0xff]
    %v402 = vld [vmem:[#allocation4 + $0x208] sm:$0xff]
    %v403 = vld [vmem:[#allocation4 + $0x210] sm:$0xff]
    %v404 = vld [vmem:[#allocation4 + $0x218] sm:$0xff]
    %v405 = vld [vmem:[#allocation4 + $0x220] sm:$0xff]
    %v406 = vld [vmem:[#allocation4 + $0x228] sm:$0xff]
    %v407 = vld [vmem:[#allocation4 + $0x230] sm:$0xff]
    %v408 = vld [vmem:[#allocation4 + $0x238] sm:$0xff]
    %v409 = vld [vmem:[#allocation4 + $0x240] sm:$0xff]
    %v410 = vld [vmem:[#allocation4 + $0x248] sm:$0xff]
    %v411 = vld [vmem:[#allocation4 + $0x250] sm:$0xff]
    %v412 = vld [vmem:[#allocation4 + $0x258] sm:$0xff]
    %v413 = vld [vmem:[#allocation4 + $0x260] sm:$0xff]
    %v414 = vld [vmem:[#allocation4 + $0x268] sm:$0xff]
    %v415 = vld [vmem:[#allocation4 + $0x270] sm:$0xff]
    %v416 = vld [vmem:[#allocation4 + $0x278] sm:$0xff]
    %v417 = vld [vmem:[#allocation4 + $0x280] sm:$0xff]
    %v418 = vld [vmem:[#allocation4 + $0x288] sm:$0xff]
    %v419 = vld [vmem:[#allocation4 + $0x290] sm:$0xff]
    %v420 = vld [vmem:[#allocation4 + $0x298] sm:$0xff]
    %v421 = vld [vmem:[#allocation4 + $0x2a0] sm:$0xff]
    %v422 = vld [vmem:[#allocation4 + $0x2a8] sm:$0xff]
    %v423 = vld [vmem:[#allocation4 + $0x2b0] sm:$0xff]
    %v424 = vld [vmem:[#allocation4 + $0x2b8] sm:$0xff]
    %v425 = vld [vmem:[#allocation4 + $0x2c0] sm:$0xff]
    %v426 = vld [vmem:[#allocation4 + $0x2c8] sm:$0xff]
    %v427 = vld [vmem:[#allocation4 + $0x2d0] sm:$0xff]
    %v428 = vld [vmem:[#allocation4 + $0x2d8] sm:$0xff]
    %v429 = vld [vmem:[#allocation4 + $0x2e0] sm:$0xff]
    %v430 = vld [vmem:[#allocation4 + $0x2e8] sm:$0xff]
    %v431 = vld [vmem:[#allocation4 + $0x2f0] sm:$0xff]
    %v432 = vld [vmem:[#allocation4 + $0x2f8] sm:$0xff]
    %v433 = vld [vmem:[#allocation4 + $0x300] sm:$0xff]
    %v434 = vld [vmem:[#allocation4 + $0x308] sm:$0xff]
    %v435 = vld [vmem:[#allocation4 + $0x310] sm:$0xff]
    %v436 = vld [vmem:[#allocation4 + $0x318] sm:$0xff]
    %v437 = vld [vmem:[#allocation4 + $0x320] sm:$0xff]
    %v438 = vld [vmem:[#allocation4 + $0x328] sm:$0xff]
    %v439 = vld [vmem:[#allocation4 + $0x330] sm:$0xff]
    %v440 = vld [vmem:[#allocation4 + $0x338] sm:$0xff]
    %v441 = vld [vmem:[#allocation4 + $0x340] sm:$0xff]
    %v442 = vld [vmem:[#allocation4 + $0x348] sm:$0xff]
    %v443 = vld [vmem:[#allocation4 + $0x350] sm:$0xff]
    %v444 = vld [vmem:[#allocation4 + $0x358] sm:$0xff]
    %v445 = vld [vmem:[#allocation4 + $0x360] sm:$0xff]
    %v446 = vld [vmem:[#allocation4 + $0x368] sm:$0xff]
    %v447 = vld [vmem:[#allocation4 + $0x370] sm:$0xff]
    %v448 = vld [vmem:[#allocation4 + $0x378] sm:$0xff]
    %v449 = vld [vmem:[#allocation4 + $0x4a4] sm:$0x1]
    %v450 = vld [vmem:[#allocation3] sm:$0xff]
    %451 = vmatpush.msra.mxu0 %v416
    %452 = vmatpush.msra.mxu0 %v415
    %453 = vmatpush.msra.mxu0 %v414
    %454 = vmatpush.msra.mxu0 %v413
    %455 = vmatpush.msra.mxu0 %v412
    %456 = vmatpush.msra.mxu0 %v411
    %457 = vmatpush.msra.mxu0 %v410
    %458 = vmatpush.msra.mxu0 %v409
    %459 = vmatpush.msra.mxu0 %v408
    %460 = vmatpush.msra.mxu0 %v407
    %461 = vmatpush.msra.mxu0 %v406
    %462 = vmatpush.msra.mxu0 %v405
    %463 = vmatpush.msra.mxu0 %v404
    %464 = vmatpush.msra.mxu0 %v403
    %465 = vmatpush.msra.mxu0 %v402
    %466 = vmatpush.msra.mxu0 %v401
    %467 = vmatmul.f32.gmra.mxu0 0.0
    %v468 = vpop.f32.mrf.mxu0
    %v469 = vadd.f32 0.0, %v468
    %470 = vdwg.mxu0
    %v471 = vadd.f32 %v450, %v469
    %v472 = vadd.f32 %v471, %v471
    %v473 = vsel %vm400, %v472, %v471
    %v474 = vxor.u32 %v473, 2147483648
    %v475 = vmul.f32 %v474, 1.442695
    %v476 = vpow.pop %v475
    %v477 = vadd.f32 %v476, 1.0
    %v478 = vrcp.pop %v477
    %v479 = vmul.f32 %v477, %v478
    %v480 = vsub.f32 1.0, %v479
    %v481 = vmul.f32 %v478, %v480
    %v482 = vadd.f32 %v478, %v481
    %vm483 = vweird.f32 %v477
    %vm484 = vweird.f32 %v478
    %vm485 = vmor %vm483, %vm484
    %v486 = vsel %vm485, %v478, %v482
    %v487 = vand.u32 2147483647, %v477
    %vm488 = vcmp.eq.f32.partialorder %v487, 8.507059e+37
    %v489 = vand.u32 %v477, 2147483648
    %v490 = vor.u32 1.1754944e-38, %v489
    %v491 = vsel %vm488, %v490, %v486
    %v492 = vmul.f32 1.0, %v491
    %v493 = vadd.f32 %v492, %v492
    %v494 = vsub.f32 %v493, 1.0
    %v495 = vsel %vm400, %v494, %v492
    %496 = vrot.lane.b32.xlu0 %v495, 96
    %v497 = vpop.permute.xlu0 %496
    %498 = vrot.lane.b32.xlu0 %v495, 64
    %v499 = vpop.permute.xlu0 %498
    %500 = vrot.lane.b32.xlu0 %v495, 32
    %v501 = vpop.permute.xlu0 %500
    %v502 = vmul.f32 %v497, 0.0
    %v503 = vmul.f32 %v495, %v499
    %v504 = vadd.f32 %v502, %v503
    %v505 = vtanh.pop %v504
    %v506 = vmul.f32 %v501, %v505
    %507 = vmatpush.msra.mxu0 %v448
    %508 = vmatpush.msra.mxu0 %v447
    %509 = vmatpush.msra.mxu0 %v446
    %510 = vmatpush.msra.mxu0 %v445
    %511 = vmatpush.msra.mxu0 %v444
    %512 = vmatpush.msra.mxu0 %v443
    %513 = vmatpush.msra.mxu0 %v442
    %514 = vmatpush.msra.mxu0 %v441
    %515 = vmatpush.msra.mxu0 %v440
    %516 = vmatpush.msra.mxu0 %v439
    %517 = vmatpush.msra.mxu0 %v438
    %518 = vmatpush.msra.mxu0 %v437
    %519 = vmatpush.msra.mxu0 %v436
    %520 = vmatpush.msra.mxu0 %v435
    %521 = vmatpush.msra.mxu0 %v434
    %522 = vmatpush.msra.mxu0 %v433
    %523 = vmatmul.f32.gmra.mxu0 0.0
    %v524 = vpop.f32.mrf.mxu0
    %v525 = vadd.f32 0.0, %v524
    %526 = vdwg.mxu0
    %527 = vmatpush.msra.mxu0 %v432
    %528 = vmatpush.msra.mxu0 %v431
    %529 = vmatpush.msra.mxu0 %v430
    %530 = vmatpush.msra.mxu0 %v429
    %531 = vmatpush.msra.mxu0 %v428
    %532 = vmatpush.msra.mxu0 %v427
    %533 = vmatpush.msra.mxu0 %v426
    %534 = vmatpush.msra.mxu0 %v425
    %535 = vmatpush.msra.mxu0 %v424
    %536 = vmatpush.msra.mxu0 %v423
    %537 = vmatpush.msra.mxu0 %v422
    %538 = vmatpush.msra.mxu0 %v421
    %539 = vmatpush.msra.mxu0 %v420
    %540 = vmatpush.msra.mxu0 %v419
    %541 = vmatpush.msra.mxu0 %v418
    %542 = vmatpush.msra.mxu0 %v417
    %543 = vmatmul.f32.gmra.mxu0 %v506
    %v544 = vpop.f32.mrf.mxu0
    %v545 = vadd.f32 %v525, %v544
    %546 = vdwg.mxu0
    %v547 = vperm.slane %v449, 0
    %v548 = vadd.f32 %v545, %v547
    %v549 = vadd.f32 %v548, %v548
    %v550 = vsel %vm400, %v549, %v548
    %v551 = vxor.u32 %v550, 2147483648
    %v552 = vmul.f32 %v551, 1.442695
    %v553 = vpow.pop %v552
    %v554 = vadd.f32 %v553, 1.0
    %v555 = vrcp.pop %v554
    %v556 = vmul.f32 %v554, %v555
    %v557 = vsub.f32 1.0, %v556
    %v558 = vmul.f32 %v555, %v557
    %v559 = vadd.f32 %v555, %v558
    %vm560 = vweird.f32 %v554
    %vm561 = vweird.f32 %v555
    %vm562 = vmor %vm560, %vm561
    %v563 = vsel %vm562, %v555, %v559
    %v564 = vand.u32 2147483647, %v554
    %vm565 = vcmp.eq.f32.partialorder %v564, 8.507059e+37
    %v566 = vand.u32 %v554, 2147483648
    %v567 = vor.u32 1.1754944e-38, %v566
    %v568 = vsel %vm565, %v567, %v563
    %v569 = vmul.f32 1.0, %v568
    %v570 = vadd.f32 %v569, %v569
    %v571 = vsub.f32 %v570, 1.0
    %v572 = vsel %vm400, %v571, %v569
    %573 = vrot.lane.b32.xlu0 %v572, 96
    %v574 = vpop.permute.xlu0 %573
    %575 = vrot.lane.b32.xlu0 %v572, 64
    %v576 = vpop.permute.xlu0 %575
    %577 = vrot.lane.b32.xlu0 %v572, 32
    %v578 = vpop.permute.xlu0 %577
    %v579 = vmul.f32 %v574, 0.0
    %v580 = vmul.f32 %v572, %v576
    %v581 = vadd.f32 %v579, %v580
    %v582 = vtanh.pop %v581
    %v583 = vmul.f32 %v578, %v582
    %584 = vst [vmem:[#allocation2] sm:$0xff] %v583
    %v585 = vld [vmem:[#allocation3 + $0x8] sm:$0xff]
    %586 = vmatpush.msra.mxu0 %v416
    %587 = vmatpush.msra.mxu0 %v415
    %588 = vmatpush.msra.mxu0 %v414
    %589 = vmatpush.msra.mxu0 %v413
    %590 = vmatpush.msra.mxu0 %v412
    %591 = vmatpush.msra.mxu0 %v411
    %592 = vmatpush.msra.mxu0 %v410
    %593 = vmatpush.msra.mxu0 %v409
    %594 = vmatpush.msra.mxu0 %v408
    %595 = vmatpush.msra.mxu0 %v407
    %596 = vmatpush.msra.mxu0 %v406
    %597 = vmatpush.msra.mxu0 %v405
    %598 = vmatpush.msra.mxu0 %v404
    %599 = vmatpush.msra.mxu0 %v403
    %600 = vmatpush.msra.mxu0 %v402
    %601 = vmatpush.msra.mxu0 %v401
    %602 = vmatmul.f32.gmra.mxu0 %v506
    %v603 = vpop.f32.mrf.mxu0
    %v604 = vadd.f32 0.0, %v603
    %605 = vdwg.mxu0
    %v606 = vadd.f32 %v585, %v604
    %v607 = vadd.f32 %v606, %v606
    %v608 = vsel %vm400, %v607, %v606
    %v609 = vxor.u32 %v608, 2147483648
    %v610 = vmul.f32 %v609, 1.442695
    %v611 = vpow.pop %v610
    %v612 = vadd.f32 %v611, 1.0
    %v613 = vrcp.pop %v612
    %v614 = vmul.f32 %v612, %v613
    %v615 = vsub.f32 1.0, %v614
    %v616 = vmul.f32 %v613, %v615
    %v617 = vadd.f32 %v613, %v616
    %vm618 = vweird.f32 %v612
    %vm619 = vweird.f32 %v613
    %vm620 = vmor %vm618, %vm619
    %v621 = vsel %vm620, %v613, %v617
    %v622 = vand.u32 2147483647, %v612
    %vm623 = vcmp.eq.f32.partialorder %v622, 8.507059e+37
    %v624 = vand.u32 %v612, 2147483648
    %v625 = vor.u32 1.1754944e-38, %v624
    %v626 = vsel %vm623, %v625, %v621
    %v627 = vmul.f32 1.0, %v626
    %v628 = vadd.f32 %v627, %v627
    %v629 = vsub.f32 %v628, 1.0
    %v630 = vsel %vm400, %v629, %v627
    %631 = vrot.lane.b32.xlu0 %v630, 96
    %v632 = vpop.permute.xlu0 %631
    %633 = vrot.lane.b32.xlu0 %v630, 64
    %v634 = vpop.permute.xlu0 %633
    %635 = vrot.lane.b32.xlu0 %v630, 32
    %v636 = vpop.permute.xlu0 %635
    %v637 = vmul.f32 %v632, %v504
    %v638 = vmul.f32 %v630, %v634
    %v639 = vadd.f32 %v637, %v638
    %v640 = vtanh.pop %v639
    %v641 = vmul.f32 %v636, %v640
    %642 = vmatpush.msra.mxu0 %v448
    %643 = vmatpush.msra.mxu0 %v447
    %644 = vmatpush.msra.mxu0 %v446
    %645 = vmatpush.msra.mxu0 %v445
    %646 = vmatpush.msra.mxu0 %v444
    %647 = vmatpush.msra.mxu0 %v443
    %648 = vmatpush.msra.mxu0 %v442
    %649 = vmatpush.msra.mxu0 %v441
    %650 = vmatpush.msra.mxu0 %v440
    %651 = vmatpush.msra.mxu0 %v439
    %652 = vmatpush.msra.mxu0 %v438
    %653 = vmatpush.msra.mxu0 %v437
    %654 = vmatpush.msra.mxu0 %v436
    %655 = vmatpush.msra.mxu0 %v435
    %656 = vmatpush.msra.mxu0 %v434
    %657 = vmatpush.msra.mxu0 %v433
    %658 = vmatmul.f32.gmra.mxu0 %v583
    %v659 = vpop.f32.mrf.mxu0
    %v660 = vadd.f32 0.0, %v659
    %661 = vdwg.mxu0
    %662 = vmatpush.msra.mxu0 %v432
    %663 = vmatpush.msra.mxu0 %v431
    %664 = vmatpush.msra.mxu0 %v430
    %665 = vmatpush.msra.mxu0 %v429
    %666 = vmatpush.msra.mxu0 %v428
    %667 = vmatpush.msra.mxu0 %v427
    %668 = vmatpush.msra.mxu0 %v426
    %669 = vmatpush.msra.mxu0 %v425
    %670 = vmatpush.msra.mxu0 %v424
    %671 = vmatpush.msra.mxu0 %v423
    %672 = vmatpush.msra.mxu0 %v422
    %673 = vmatpush.msra.mxu0 %v421
    %674 = vmatpush.msra.mxu0 %v420
    %675 = vmatpush.msra.mxu0 %v419
    %676 = vmatpush.msra.mxu0 %v418
    %677 = vmatpush.msra.mxu0 %v417
    %678 = vmatmul.f32.gmra.mxu0 %v641
    %v679 = vpop.f32.mrf.mxu0
    %v680 = vadd.f32 %v660, %v679
    %681 = vdwg.mxu0
    %v682 = vadd.f32 %v680, %v547
    %v683 = vadd.f32 %v682, %v682
    %v684 = vsel %vm400, %v683, %v682
    %v685 = vxor.u32 %v684, 2147483648
    %v686 = vmul.f32 %v685, 1.442695
    %v687 = vpow.pop %v686
    %v688 = vadd.f32 %v687, 1.0
    %v689 = vrcp.pop %v688
    %v690 = vmul.f32 %v688, %v689
    %v691 = vsub.f32 1.0, %v690
    %v692 = vmul.f32 %v689, %v691
    %v693 = vadd.f32 %v689, %v692
    %vm694 = vweird.f32 %v688
    %vm695 = vweird.f32 %v689
    %vm696 = vmor %vm694, %vm695
    %v697 = vsel %vm696, %v689, %v693
    %v698 = vand.u32 2147483647, %v688
    %vm699 = vcmp.eq.f32.partialorder %v698, 8.507059e+37
    %v700 = vand.u32 %v688, 2147483648
    %v701 = vor.u32 1.1754944e-38, %v700
    %v702 = vsel %vm699, %v701, %v697
    %v703 = vmul.f32 1.0, %v702
    %v704 = vadd.f32 %v703, %v703
    %v705 = vsub.f32 %v704, 1.0
    %v706 = vsel %vm400, %v705, %v703
    %707 = vrot.lane.b32.xlu0 %v706, 96
    %v708 = vpop.permute.xlu0 %707
    %709 = vrot.lane.b32.xlu0 %v706, 64
    %v710 = vpop.permute.xlu0 %709
    %711 = vrot.lane.b32.xlu0 %v706, 32
    %v712 = vpop.permute.xlu0 %711
    %v713 = vmul.f32 %v708, %v581
    %v714 = vmul.f32 %v706, %v710
    %v715 = vadd.f32 %v713, %v714
    %v716 = vtanh.pop %v715
    %v717 = vmul.f32 %v712, %v716
    %718 = vst [vmem:[#allocation2 + $0x8] sm:$0xff] %v717
    %v719 = vld [vmem:[#allocation3 + $0x10] sm:$0xff]
    %720 = vmatpush.msra.mxu0 %v416
    %721 = vmatpush.msra.mxu0 %v415
    %722 = vmatpush.msra.mxu0 %v414
    %723 = vmatpush.msra.mxu0 %v413
    %724 = vmatpush.msra.mxu0 %v412
    %725 = vmatpush.msra.mxu0 %v411
    %726 = vmatpush.msra.mxu0 %v410
    %727 = vmatpush.msra.mxu0 %v409
    %728 = vmatpush.msra.mxu0 %v408
    %729 = vmatpush.msra.mxu0 %v407
    %730 = vmatpush.msra.mxu0 %v406
    %731 = vmatpush.msra.mxu0 %v405
    %732 = vmatpush.msra.mxu0 %v404
    %733 = vmatpush.msra.mxu0 %v403
    %734 = vmatpush.msra.mxu0 %v402
    %735 = vmatpush.msra.mxu0 %v401
    %736 = vmatmul.f32.gmra.mxu0 %v641
    %v737 = vpop.f32.mrf.mxu0
    %v738 = vadd.f32 0.0, %v737
    %739 = vdwg.mxu0
    %v740 = vadd.f32 %v719, %v738
    %v741 = vadd.f32 %v740, %v740
    %v742 = vsel %vm400, %v741, %v740
    %v743 = vxor.u32 %v742, 2147483648
    %v744 = vmul.f32 %v743, 1.442695
    %v745 = vpow.pop %v744
    %v746 = vadd.f32 %v745, 1.0
    %v747 = vrcp.pop %v746
    %v748 = vmul.f32 %v746, %v747
    %v749 = vsub.f32 1.0, %v748
    %v750 = vmul.f32 %v747, %v749
    %v751 = vadd.f32 %v747, %v750
    %vm752 = vweird.f32 %v746
    %vm753 = vweird.f32 %v747
    %vm754 = vmor %vm752, %vm753
    %v755 = vsel %vm754, %v747, %v751
    %v756 = vand.u32 2147483647, %v746
    %vm757 = vcmp.eq.f32.partialorder %v756, 8.507059e+37
    %v758 = vand.u32 %v746, 2147483648
    %v759 = vor.u32 1.1754944e-38, %v758
    %v760 = vsel %vm757, %v759, %v755
    %v761 = vmul.f32 1.0, %v760
    %v762 = vadd.f32 %v761, %v761
    %v763 = vsub.f32 %v762, 1.0
    %v764 = vsel %vm400, %v763, %v761
    %765 = vrot.lane.b32.xlu0 %v764, 96
    %v766 = vpop.permute.xlu0 %765
    %767 = vrot.lane.b32.xlu0 %v764, 64
    %v768 = vpop.permute.xlu0 %767
    %769 = vrot.lane.b32.xlu0 %v764, 32
    %v770 = vpop.permute.xlu0 %769
    %v771 = vmul.f32 %v766, %v639
    %v772 = vmul.f32 %v764, %v768
    %v773 = vadd.f32 %v771, %v772
    %v774 = vtanh.pop %v773
    %v775 = vmul.f32 %v770, %v774
    %776 = vmatpush.msra.mxu0 %v448
    %777 = vmatpush.msra.mxu0 %v447
    %778 = vmatpush.msra.mxu0 %v446
    %779 = vmatpush.msra.mxu0 %v445
    %780 = vmatpush.msra.mxu0 %v444
    %781 = vmatpush.msra.mxu0 %v443
    %782 = vmatpush.msra.mxu0 %v442
    %783 = vmatpush.msra.mxu0 %v441
    %784 = vmatpush.msra.mxu0 %v440
    %785 = vmatpush.msra.mxu0 %v439
    %786 = vmatpush.msra.mxu0 %v438
    %787 = vmatpush.msra.mxu0 %v437
    %788 = vmatpush.msra.mxu0 %v436
    %789 = vmatpush.msra.mxu0 %v435
    %790 = vmatpush.msra.mxu0 %v434
    %791 = vmatpush.msra.mxu0 %v433
    %792 = vmatmul.f32.gmra.mxu0 %v717
    %v793 = vpop.f32.mrf.mxu0
    %v794 = vadd.f32 0.0, %v793
    %795 = vdwg.mxu0
    %796 = vmatpush.msra.mxu0 %v432
    %797 = vmatpush.msra.mxu0 %v431
    %798 = vmatpush.msra.mxu0 %v430
    %799 = vmatpush.msra.mxu0 %v429
    %800 = vmatpush.msra.mxu0 %v428
    %801 = vmatpush.msra.mxu0 %v427
    %802 = vmatpush.msra.mxu0 %v426
    %803 = vmatpush.msra.mxu0 %v425
    %804 = vmatpush.msra.mxu0 %v424
    %805 = vmatpush.msra.mxu0 %v423
    %806 = vmatpush.msra.mxu0 %v422
    %807 = vmatpush.msra.mxu0 %v421
    %808 = vmatpush.msra.mxu0 %v420
    %809 = vmatpush.msra.mxu0 %v419
    %810 = vmatpush.msra.mxu0 %v418
    %811 = vmatpush.msra.mxu0 %v417
    %812 = vmatmul.f32.gmra.mxu0 %v775
    %v813 = vpop.f32.mrf.mxu0
    %v814 = vadd.f32 %v794, %v813
    %815 = vdwg.mxu0
    %v816 = vadd.f32 %v814, %v547
    %v817 = vadd.f32 %v816, %v816
    %v818 = vsel %vm400, %v817, %v816
    %v819 = vxor.u32 %v818, 2147483648
    %v820 = vmul.f32 %v819, 1.442695
    %v821 = vpow.pop %v820
    %v822 = vadd.f32 %v821, 1.0
    %v823 = vrcp.pop %v822
    %v824 = vmul.f32 %v822, %v823
    %v825 = vsub.f32 1.0, %v824
    %v826 = vmul.f32 %v823, %v825
    %v827 = vadd.f32 %v823, %v826
    %vm828 = vweird.f32 %v822
    %vm829 = vweird.f32 %v823
    %vm830 = vmor %vm828, %vm829
    %v831 = vsel %vm830, %v823, %v827
    %v832 = vand.u32 2147483647, %v822
    %vm833 = vcmp.eq.f32.partialorder %v832, 8.507059e+37
    %v834 = vand.u32 %v822, 2147483648
    %v835 = vor.u32 1.1754944e-38, %v834
    %v836 = vsel %vm833, %v835, %v831
    %v837 = vmul.f32 1.0, %v836
    %v838 = vadd.f32 %v837, %v837
    %v839 = vsub.f32 %v838, 1.0
    %v840 = vsel %vm400, %v839, %v837
    %841 = vrot.lane.b32.xlu0 %v840, 96
    %v842 = vpop.permute.xlu0 %841
    %843 = vrot.lane.b32.xlu0 %v840, 64
    %v844 = vpop.permute.xlu0 %843
    %845 = vrot.lane.b32.xlu0 %v840, 32
    %v846 = vpop.permute.xlu0 %845
    %v847 = vmul.f32 %v842, %v715
    %v848 = vmul.f32 %v840, %v844
    %v849 = vadd.f32 %v847, %v848
    %v850 = vtanh.pop %v849
    %v851 = vmul.f32 %v846, %v850
    %852 = vst [vmem:[#allocation2 + $0x10] sm:$0xff] %v851
    %v853 = vld [vmem:[#allocation3 + $0x18] sm:$0xff]
    %854 = vmatpush.msra.mxu0 %v416
    %855 = vmatpush.msra.mxu0 %v415
    %856 = vmatpush.msra.mxu0 %v414
    %857 = vmatpush.msra.mxu0 %v413
    %858 = vmatpush.msra.mxu0 %v412
    %859 = vmatpush.msra.mxu0 %v411
    %860 = vmatpush.msra.mxu0 %v410
    %861 = vmatpush.msra.mxu0 %v409
    %862 = vmatpush.msra.mxu0 %v408
    %863 = vmatpush.msra.mxu0 %v407
    %864 = vmatpush.msra.mxu0 %v406
    %865 = vmatpush.msra.mxu0 %v405
    %866 = vmatpush.msra.mxu0 %v404
    %867 = vmatpush.msra.mxu0 %v403
    %868 = vmatpush.msra.mxu0 %v402
    %869 = vmatpush.msra.mxu0 %v401
    %870 = vmatmul.f32.gmra.mxu0 %v775
    %v871 = vpop.f32.mrf.mxu0
    %v872 = vadd.f32 0.0, %v871
    %873 = vdwg.mxu0
    %v874 = vadd.f32 %v853, %v872
    %v875 = vadd.f32 %v874, %v874
    %v876 = vsel %vm400, %v875, %v874
    %v877 = vxor.u32 %v876, 2147483648
    %v878 = vmul.f32 %v877, 1.442695
    %v879 = vpow.pop %v878
    %v880 = vadd.f32 %v879, 1.0
    %v881 = vrcp.pop %v880
    %v882 = vmul.f32 %v880, %v881
    %v883 = vsub.f32 1.0, %v882
    %v884 = vmul.f32 %v881, %v883
    %v885 = vadd.f32 %v881, %v884
    %vm886 = vweird.f32 %v880
    %vm887 = vweird.f32 %v881
    %vm888 = vmor %vm886, %vm887
    %v889 = vsel %vm888, %v881, %v885
    %v890 = vand.u32 2147483647, %v880
    %vm891 = vcmp.eq.f32.partialorder %v890, 8.507059e+37
    %v892 = vand.u32 %v880, 2147483648
    %v893 = vor.u32 1.1754944e-38, %v892
    %v894 = vsel %vm891, %v893, %v889
    %v895 = vmul.f32 1.0, %v894
    %v896 = vadd.f32 %v895, %v895
    %v897 = vsub.f32 %v896, 1.0
    %v898 = vsel %vm400, %v897, %v895
    %899 = vrot.lane.b32.xlu0 %v898, 96
    %v900 = vpop.permute.xlu0 %899
    %901 = vrot.lane.b32.xlu0 %v898, 64
    %v902 = vpop.permute.xlu0 %901
    %903 = vrot.lane.b32.xlu0 %v898, 32
    %v904 = vpop.permute.xlu0 %903
    %v905 = vmul.f32 %v900, %v773
    %v906 = vmul.f32 %v898, %v902
    %v907 = vadd.f32 %v905, %v906
    %v908 = vtanh.pop %v907
    %v909 = vmul.f32 %v904, %v908
    %910 = vmatpush.msra.mxu0 %v448
    %911 = vmatpush.msra.mxu0 %v447
    %912 = vmatpush.msra.mxu0 %v446
    %913 = vmatpush.msra.mxu0 %v445
    %914 = vmatpush.msra.mxu0 %v444
    %915 = vmatpush.msra.mxu0 %v443
    %916 = vmatpush.msra.mxu0 %v442
    %917 = vmatpush.msra.mxu0 %v441
    %918 = vmatpush.msra.mxu0 %v440
    %919 = vmatpush.msra.mxu0 %v439
    %920 = vmatpush.msra.mxu0 %v438
    %921 = vmatpush.msra.mxu0 %v437
    %922 = vmatpush.msra.mxu0 %v436
    %923 = vmatpush.msra.mxu0 %v435
    %924 = vmatpush.msra.mxu0 %v434
    %925 = vmatpush.msra.mxu0 %v433
    %926 = vmatmul.f32.gmra.mxu0 %v851
    %v927 = vpop.f32.mrf.mxu0
    %v928 = vadd.f32 0.0, %v927
    %929 = vdwg.mxu0
    %930 = vmatpush.msra.mxu0 %v432
    %931 = vmatpush.msra.mxu0 %v431
    %932 = vmatpush.msra.mxu0 %v430
    %933 = vmatpush.msra.mxu0 %v429
    %934 = vmatpush.msra.mxu0 %v428
    %935 = vmatpush.msra.mxu0 %v427
    %936 = vmatpush.msra.mxu0 %v426
    %937 = vmatpush.msra.mxu0 %v425
    %938 = vmatpush.msra.mxu0 %v424
    %939 = vmatpush.msra.mxu0 %v423
    %940 = vmatpush.msra.mxu0 %v422
    %941 = vmatpush.msra.mxu0 %v421
    %942 = vmatpush.msra.mxu0 %v420
    %943 = vmatpush.msra.mxu0 %v419
    %944 = vmatpush.msra.mxu0 %v418
    %945 = vmatpush.msra.mxu0 %v417
    %946 = vmatmul.f32.gmra.mxu0 %v909
    %v947 = vpop.f32.mrf.mxu0
    %v948 = vadd.f32 %v928, %v947
    %949 = vdwg.mxu0
    %v950 = vadd.f32 %v948, %v547
    %v951 = vadd.f32 %v950, %v950
    %v952 = vsel %vm400, %v951, %v950
    %v953 = vxor.u32 %v952, 2147483648
    %v954 = vmul.f32 %v953, 1.442695
    %v955 = vpow.pop %v954
    %v956 = vadd.f32 %v955, 1.0
    %v957 = vrcp.pop %v956
    %v958 = vmul.f32 %v956, %v957
    %v959 = vsub.f32 1.0, %v958
    %v960 = vmul.f32 %v957, %v959
    %v961 = vadd.f32 %v957, %v960
    %vm962 = vweird.f32 %v956
    %vm963 = vweird.f32 %v957
    %vm964 = vmor %vm962, %vm963
    %v965 = vsel %vm964, %v957, %v961
    %v966 = vand.u32 2147483647, %v956
    %vm967 = vcmp.eq.f32.partialorder %v966, 8.507059e+37
    %v968 = vand.u32 %v956, 2147483648
    %v969 = vor.u32 1.1754944e-38, %v968
    %v970 = vsel %vm967, %v969, %v965
    %v971 = vmul.f32 1.0, %v970
    %v972 = vadd.f32 %v971, %v971
    %v973 = vsub.f32 %v972, 1.0
    %v974 = vsel %vm400, %v973, %v971
    %975 = vrot.lane.b32.xlu0 %v974, 96
    %v976 = vpop.permute.xlu0 %975
    %977 = vrot.lane.b32.xlu0 %v974, 64
    %v978 = vpop.permute.xlu0 %977
    %979 = vrot.lane.b32.xlu0 %v974, 32
    %v980 = vpop.permute.xlu0 %979
    %v981 = vmul.f32 %v976, %v849
    %v982 = vmul.f32 %v974, %v978
    %v983 = vadd.f32 %v981, %v982
    %v984 = vtanh.pop %v983
    %v985 = vmul.f32 %v980, %v984
    %986 = vst [vmem:[#allocation2 + $0x18] sm:$0xff] %v985
    %v987 = vld [vmem:[#allocation3 + $0x20] sm:$0xff]
    %988 = vmatpush.msra.mxu0 %v416
    %989 = vmatpush.msra.mxu0 %v415
    %990 = vmatpush.msra.mxu0 %v414
    %991 = vmatpush.msra.mxu0 %v413
    %992 = vmatpush.msra.mxu0 %v412
    %993 = vmatpush.msra.mxu0 %v411
    %994 = vmatpush.msra.mxu0 %v410
    %995 = vmatpush.msra.mxu0 %v409
    %996 = vmatpush.msra.mxu0 %v408
    %997 = vmatpush.msra.mxu0 %v407
    %998 = vmatpush.msra.mxu0 %v406
    %999 = vmatpush.msra.mxu0 %v405
    %1000 = vmatpush.msra.mxu0 %v404
    %1001 = vmatpush.msra.mxu0 %v403
    %1002 = vmatpush.msra.mxu0 %v402
    %1003 = vmatpush.msra.mxu0 %v401
    %1004 = vmatmul.f32.gmra.mxu0 %v909
    %v1005 = vpop.f32.mrf.mxu0
    %v1006 = vadd.f32 0.0, %v1005
    %1007 = vdwg.mxu0
    %v1008 = vadd.f32 %v987, %v1006
    %v1009 = vadd.f32 %v1008, %v1008
    %v1010 = vsel %vm400, %v1009, %v1008
    %v1011 = vxor.u32 %v1010, 2147483648
    %v1012 = vmul.f32 %v1011, 1.442695
    %v1013 = vpow.pop %v1012
    %v1014 = vadd.f32 %v1013, 1.0
    %v1015 = vrcp.pop %v1014
    %v1016 = vmul.f32 %v1014, %v1015
    %v1017 = vsub.f32 1.0, %v1016
    %v1018 = vmul.f32 %v1015, %v1017
    %v1019 = vadd.f32 %v1015, %v1018
    %vm1020 = vweird.f32 %v1014
    %vm1021 = vweird.f32 %v1015
    %vm1022 = vmor %vm1020, %vm1021
    %v1023 = vsel %vm1022, %v1015, %v1019
    %v1024 = vand.u32 2147483647, %v1014
    %vm1025 = vcmp.eq.f32.partialorder %v1024, 8.507059e+37
    %v1026 = vand.u32 %v1014, 2147483648
    %v1027 = vor.u32 1.1754944e-38, %v1026
    %v1028 = vsel %vm1025, %v1027, %v1023
    %v1029 = vmul.f32 1.0, %v1028
    %v1030 = vadd.f32 %v1029, %v1029
    %v1031 = vsub.f32 %v1030, 1.0
    %v1032 = vsel %vm400, %v1031, %v1029
    %1033 = vrot.lane.b32.xlu0 %v1032, 96
    %v1034 = vpop.permute.xlu0 %1033
    %1035 = vrot.lane.b32.xlu0 %v1032, 64
    %v1036 = vpop.permute.xlu0 %1035
    %1037 = vrot.lane.b32.xlu0 %v1032, 32
    %v1038 = vpop.permute.xlu0 %1037
    %v1039 = vmul.f32 %v1034, %v907
    %v1040 = vmul.f32 %v1032, %v1036
    %v1041 = vadd.f32 %v1039, %v1040
    %v1042 = vtanh.pop %v1041
    %v1043 = vmul.f32 %v1038, %v1042
    %1044 = vmatpush.msra.mxu0 %v448
    %1045 = vmatpush.msra.mxu0 %v447
    %1046 = vmatpush.msra.mxu0 %v446
    %1047 = vmatpush.msra.mxu0 %v445
    %1048 = vmatpush.msra.mxu0 %v444
    %1049 = vmatpush.msra.mxu0 %v443
    %1050 = vmatpush.msra.mxu0 %v442
    %1051 = vmatpush.msra.mxu0 %v441
    %1052 = vmatpush.msra.mxu0 %v440
    %1053 = vmatpush.msra.mxu0 %v439
    %1054 = vmatpush.msra.mxu0 %v438
    %1055 = vmatpush.msra.mxu0 %v437
    %1056 = vmatpush.msra.mxu0 %v436
    %1057 = vmatpush.msra.mxu0 %v435
    %1058 = vmatpush.msra.mxu0 %v434
    %1059 = vmatpush.msra.mxu0 %v433
    %1060 = vmatmul.f32.gmra.mxu0 %v985
    %v1061 = vpop.f32.mrf.mxu0
    %v1062 = vadd.f32 0.0, %v1061
    %1063 = vdwg.mxu0
    %1064 = vmatpush.msra.mxu0 %v432
    %1065 = vmatpush.msra.mxu0 %v431
    %1066 = vmatpush.msra.mxu0 %v430
    %1067 = vmatpush.msra.mxu0 %v429
    %1068 = vmatpush.msra.mxu0 %v428
    %1069 = vmatpush.msra.mxu0 %v427
    %1070 = vmatpush.msra.mxu0 %v426
    %1071 = vmatpush.msra.mxu0 %v425
    %1072 = vmatpush.msra.mxu0 %v424
    %1073 = vmatpush.msra.mxu0 %v423
    %1074 = vmatpush.msra.mxu0 %v422
    %1075 = vmatpush.msra.mxu0 %v421
    %1076 = vmatpush.msra.mxu0 %v420
    %1077 = vmatpush.msra.mxu0 %v419
    %1078 = vmatpush.msra.mxu0 %v418
    %1079 = vmatpush.msra.mxu0 %v417
    %1080 = vmatmul.f32.gmra.mxu0 %v1043
    %v1081 = vpop.f32.mrf.mxu0
    %v1082 = vadd.f32 %v1062, %v1081
    %1083 = vdwg.mxu0
    %v1084 = vadd.f32 %v1082, %v547
    %v1085 = vadd.f32 %v1084, %v1084
    %v1086 = vsel %vm400, %v1085, %v1084
    %v1087 = vxor.u32 %v1086, 2147483648
    %v1088 = vmul.f32 %v1087, 1.442695
    %v1089 = vpow.pop %v1088
    %v1090 = vadd.f32 %v1089, 1.0
    %v1091 = vrcp.pop %v1090
    %v1092 = vmul.f32 %v1090, %v1091
    %v1093 = vsub.f32 1.0, %v1092
    %v1094 = vmul.f32 %v1091, %v1093
    %v1095 = vadd.f32 %v1091, %v1094
    %vm1096 = vweird.f32 %v1090
    %vm1097 = vweird.f32 %v1091
    %vm1098 = vmor %vm1096, %vm1097
    %v1099 = vsel %vm1098, %v1091, %v1095
    %v1100 = vand.u32 2147483647, %v1090
    %vm1101 = vcmp.eq.f32.partialorder %v1100, 8.507059e+37
    %v1102 = vand.u32 %v1090, 2147483648
    %v1103 = vor.u32 1.1754944e-38, %v1102
    %v1104 = vsel %vm1101, %v1103, %v1099
    %v1105 = vmul.f32 1.0, %v1104
    %v1106 = vadd.f32 %v1105, %v1105
    %v1107 = vsub.f32 %v1106, 1.0
    %v1108 = vsel %vm400, %v1107, %v1105
    %1109 = vrot.lane.b32.xlu0 %v1108, 96
    %v1110 = vpop.permute.xlu0 %1109
    %1111 = vrot.lane.b32.xlu0 %v1108, 64
    %v1112 = vpop.permute.xlu0 %1111
    %1113 = vrot.lane.b32.xlu0 %v1108, 32
    %v1114 = vpop.permute.xlu0 %1113
    %v1115 = vmul.f32 %v1110, %v983
    %v1116 = vmul.f32 %v1108, %v1112
    %v1117 = vadd.f32 %v1115, %v1116
    %v1118 = vtanh.pop %v1117
    %v1119 = vmul.f32 %v1114, %v1118
    %1120 = vst [vmem:[#allocation2 + $0x20] sm:$0xff] %v1119
    %v1121 = vld [vmem:[#allocation3 + $0x28] sm:$0xff]
    %1122 = vmatpush.msra.mxu0 %v416
    %1123 = vmatpush.msra.mxu0 %v415
    %1124 = vmatpush.msra.mxu0 %v414
    %1125 = vmatpush.msra.mxu0 %v413
    %1126 = vmatpush.msra.mxu0 %v412
    %1127 = vmatpush.msra.mxu0 %v411
    %1128 = vmatpush.msra.mxu0 %v410
    %1129 = vmatpush.msra.mxu0 %v409
    %1130 = vmatpush.msra.mxu0 %v408
    %1131 = vmatpush.msra.mxu0 %v407
    %1132 = vmatpush.msra.mxu0 %v406
    %1133 = vmatpush.msra.mxu0 %v405
    %1134 = vmatpush.msra.mxu0 %v404
    %1135 = vmatpush.msra.mxu0 %v403
    %1136 = vmatpush.msra.mxu0 %v402
    %1137 = vmatpush.msra.mxu0 %v401
    %1138 = vmatmul.f32.gmra.mxu0 %v1043
    %v1139 = vpop.f32.mrf.mxu0
    %v1140 = vadd.f32 0.0, %v1139
    %1141 = vdwg.mxu0
    %v1142 = vadd.f32 %v1121, %v1140
    %v1143 = vadd.f32 %v1142, %v1142
    %v1144 = vsel %vm400, %v1143, %v1142
    %v1145 = vxor.u32 %v1144, 2147483648
    %v1146 = vmul.f32 %v1145, 1.442695
    %v1147 = vpow.pop %v1146
    %v1148 = vadd.f32 %v1147, 1.0
    %v1149 = vrcp.pop %v1148
    %v1150 = vmul.f32 %v1148, %v1149
    %v1151 = vsub.f32 1.0, %v1150
    %v1152 = vmul.f32 %v1149, %v1151
    %v1153 = vadd.f32 %v1149, %v1152
    %vm1154 = vweird.f32 %v1148
    %vm1155 = vweird.f32 %v1149
    %vm1156 = vmor %vm1154, %vm1155
    %v1157 = vsel %vm1156, %v1149, %v1153
    %v1158 = vand.u32 2147483647, %v1148
    %vm1159 = vcmp.eq.f32.partialorder %v1158, 8.507059e+37
    %v1160 = vand.u32 %v1148, 2147483648
    %v1161 = vor.u32 1.1754944e-38, %v1160
    %v1162 = vsel %vm1159, %v1161, %v1157
    %v1163 = vmul.f32 1.0, %v1162
    %v1164 = vadd.f32 %v1163, %v1163
    %v1165 = vsub.f32 %v1164, 1.0
    %v1166 = vsel %vm400, %v1165, %v1163
    %1167 = vrot.lane.b32.xlu0 %v1166, 96
    %v1168 = vpop.permute.xlu0 %1167
    %1169 = vrot.lane.b32.xlu0 %v1166, 64
    %v1170 = vpop.permute.xlu0 %1169
    %1171 = vrot.lane.b32.xlu0 %v1166, 32
    %v1172 = vpop.permute.xlu0 %1171
    %v1173 = vmul.f32 %v1168, %v1041
    %v1174 = vmul.f32 %v1166, %v1170
    %v1175 = vadd.f32 %v1173, %v1174
    %v1176 = vtanh.pop %v1175
    %v1177 = vmul.f32 %v1172, %v1176
    %1178 = vmatpush.msra.mxu0 %v448
    %1179 = vmatpush.msra.mxu0 %v447
    %1180 = vmatpush.msra.mxu0 %v446
    %1181 = vmatpush.msra.mxu0 %v445
    %1182 = vmatpush.msra.mxu0 %v444
    %1183 = vmatpush.msra.mxu0 %v443
    %1184 = vmatpush.msra.mxu0 %v442
    %1185 = vmatpush.msra.mxu0 %v441
    %1186 = vmatpush.msra.mxu0 %v440
    %1187 = vmatpush.msra.mxu0 %v439
    %1188 = vmatpush.msra.mxu0 %v438
    %1189 = vmatpush.msra.mxu0 %v437
    %1190 = vmatpush.msra.mxu0 %v436
    %1191 = vmatpush.msra.mxu0 %v435
    %1192 = vmatpush.msra.mxu0 %v434
    %1193 = vmatpush.msra.mxu0 %v433
    %1194 = vmatmul.f32.gmra.mxu0 %v1119
    %v1195 = vpop.f32.mrf.mxu0
    %v1196 = vadd.f32 0.0, %v1195
    %1197 = vdwg.mxu0
    %1198 = vmatpush.msra.mxu0 %v432
    %1199 = vmatpush.msra.mxu0 %v431
    %1200 = vmatpush.msra.mxu0 %v430
    %1201 = vmatpush.msra.mxu0 %v429
    %1202 = vmatpush.msra.mxu0 %v428
    %1203 = vmatpush.msra.mxu0 %v427
    %1204 = vmatpush.msra.mxu0 %v426
    %1205 = vmatpush.msra.mxu0 %v425
    %1206 = vmatpush.msra.mxu0 %v424
    %1207 = vmatpush.msra.mxu0 %v423
    %1208 = vmatpush.msra.mxu0 %v422
    %1209 = vmatpush.msra.mxu0 %v421
    %1210 = vmatpush.msra.mxu0 %v420
    %1211 = vmatpush.msra.mxu0 %v419
    %1212 = vmatpush.msra.mxu0 %v418
    %1213 = vmatpush.msra.mxu0 %v417
    %1214 = vmatmul.f32.gmra.mxu0 %v1177
    %v1215 = vpop.f32.mrf.mxu0
    %v1216 = vadd.f32 %v1196, %v1215
    %1217 = vdwg.mxu0
    %v1218 = vadd.f32 %v1216, %v547
    %v1219 = vadd.f32 %v1218, %v1218
    %v1220 = vsel %vm400, %v1219, %v1218
    %v1221 = vxor.u32 %v1220, 2147483648
    %v1222 = vmul.f32 %v1221, 1.442695
    %v1223 = vpow.pop %v1222
    %v1224 = vadd.f32 %v1223, 1.0
    %v1225 = vrcp.pop %v1224
    %v1226 = vmul.f32 %v1224, %v1225
    %v1227 = vsub.f32 1.0, %v1226
    %v1228 = vmul.f32 %v1225, %v1227
    %v1229 = vadd.f32 %v1225, %v1228
    %vm1230 = vweird.f32 %v1224
    %vm1231 = vweird.f32 %v1225
    %vm1232 = vmor %vm1230, %vm1231
    %v1233 = vsel %vm1232, %v1225, %v1229
    %v1234 = vand.u32 2147483647, %v1224
    %vm1235 = vcmp.eq.f32.partialorder %v1234, 8.507059e+37
    %v1236 = vand.u32 %v1224, 2147483648
    %v1237 = vor.u32 1.1754944e-38, %v1236
    %v1238 = vsel %vm1235, %v1237, %v1233
    %v1239 = vmul.f32 1.0, %v1238
    %v1240 = vadd.f32 %v1239, %v1239
    %v1241 = vsub.f32 %v1240, 1.0
    %v1242 = vsel %vm400, %v1241, %v1239
    %1243 = vrot.lane.b32.xlu0 %v1242, 96
    %v1244 = vpop.permute.xlu0 %1243
    %1245 = vrot.lane.b32.xlu0 %v1242, 64
    %v1246 = vpop.permute.xlu0 %1245
    %1247 = vrot.lane.b32.xlu0 %v1242, 32
    %v1248 = vpop.permute.xlu0 %1247
    %v1249 = vmul.f32 %v1244, %v1117
    %v1250 = vmul.f32 %v1242, %v1246
    %v1251 = vadd.f32 %v1249, %v1250
    %v1252 = vtanh.pop %v1251
    %v1253 = vmul.f32 %v1248, %v1252
    %1254 = vst [vmem:[#allocation2 + $0x28] sm:$0xff] %v1253
    %v1255 = vld [vmem:[#allocation3 + $0x30] sm:$0xff]
    %1256 = vmatpush.msra.mxu0 %v416
    %1257 = vmatpush.msra.mxu0 %v415
    %1258 = vmatpush.msra.mxu0 %v414
    %1259 = vmatpush.msra.mxu0 %v413
    %1260 = vmatpush.msra.mxu0 %v412
    %1261 = vmatpush.msra.mxu0 %v411
    %1262 = vmatpush.msra.mxu0 %v410
    %1263 = vmatpush.msra.mxu0 %v409
    %1264 = vmatpush.msra.mxu0 %v408
    %1265 = vmatpush.msra.mxu0 %v407
    %1266 = vmatpush.msra.mxu0 %v406
    %1267 = vmatpush.msra.mxu0 %v405
    %1268 = vmatpush.msra.mxu0 %v404
    %1269 = vmatpush.msra.mxu0 %v403
    %1270 = vmatpush.msra.mxu0 %v402
    %1271 = vmatpush.msra.mxu0 %v401
    %1272 = vmatmul.f32.gmra.mxu0 %v1177
    %v1273 = vpop.f32.mrf.mxu0
    %v1274 = vadd.f32 0.0, %v1273
    %1275 = vdwg.mxu0
    %v1276 = vadd.f32 %v1255, %v1274
    %v1277 = vadd.f32 %v1276, %v1276
    %v1278 = vsel %vm400, %v1277, %v1276
    %v1279 = vxor.u32 %v1278, 2147483648
    %v1280 = vmul.f32 %v1279, 1.442695
    %v1281 = vpow.pop %v1280
    %v1282 = vadd.f32 %v1281, 1.0
    %v1283 = vrcp.pop %v1282
    %v1284 = vmul.f32 %v1282, %v1283
    %v1285 = vsub.f32 1.0, %v1284
    %v1286 = vmul.f32 %v1283, %v1285
    %v1287 = vadd.f32 %v1283, %v1286
    %vm1288 = vweird.f32 %v1282
    %vm1289 = vweird.f32 %v1283
    %vm1290 = vmor %vm1288, %vm1289
    %v1291 = vsel %vm1290, %v1283, %v1287
    %v1292 = vand.u32 2147483647, %v1282
    %vm1293 = vcmp.eq.f32.partialorder %v1292, 8.507059e+37
    %v1294 = vand.u32 %v1282, 2147483648
    %v1295 = vor.u32 1.1754944e-38, %v1294
    %v1296 = vsel %vm1293, %v1295, %v1291
    %v1297 = vmul.f32 1.0, %v1296
    %v1298 = vadd.f32 %v1297, %v1297
    %v1299 = vsub.f32 %v1298, 1.0
    %v1300 = vsel %vm400, %v1299, %v1297
    %1301 = vrot.lane.b32.xlu0 %v1300, 96
    %v1302 = vpop.permute.xlu0 %1301
    %1303 = vrot.lane.b32.xlu0 %v1300, 64
    %v1304 = vpop.permute.xlu0 %1303
    %1305 = vrot.lane.b32.xlu0 %v1300, 32
    %v1306 = vpop.permute.xlu0 %1305
    %v1307 = vmul.f32 %v1302, %v1175
    %v1308 = vmul.f32 %v1300, %v1304
    %v1309 = vadd.f32 %v1307, %v1308
    %v1310 = vtanh.pop %v1309
    %v1311 = vmul.f32 %v1306, %v1310
    %1312 = vmatpush.msra.mxu0 %v448
    %1313 = vmatpush.msra.mxu0 %v447
    %1314 = vmatpush.msra.mxu0 %v446
    %1315 = vmatpush.msra.mxu0 %v445
    %1316 = vmatpush.msra.mxu0 %v444
    %1317 = vmatpush.msra.mxu0 %v443
    %1318 = vmatpush.msra.mxu0 %v442
    %1319 = vmatpush.msra.mxu0 %v441
    %1320 = vmatpush.msra.mxu0 %v440
    %1321 = vmatpush.msra.mxu0 %v439
    %1322 = vmatpush.msra.mxu0 %v438
    %1323 = vmatpush.msra.mxu0 %v437
    %1324 = vmatpush.msra.mxu0 %v436
    %1325 = vmatpush.msra.mxu0 %v435
    %1326 = vmatpush.msra.mxu0 %v434
    %1327 = vmatpush.msra.mxu0 %v433
    %1328 = vmatmul.f32.gmra.mxu0 %v1253
    %v1329 = vpop.f32.mrf.mxu0
    %v1330 = vadd.f32 0.0, %v1329
    %1331 = vdwg.mxu0
    %1332 = vmatpush.msra.mxu0 %v432
    %1333 = vmatpush.msra.mxu0 %v431
    %1334 = vmatpush.msra.mxu0 %v430
    %1335 = vmatpush.msra.mxu0 %v429
    %1336 = vmatpush.msra.mxu0 %v428
    %1337 = vmatpush.msra.mxu0 %v427
    %1338 = vmatpush.msra.mxu0 %v426
    %1339 = vmatpush.msra.mxu0 %v425
    %1340 = vmatpush.msra.mxu0 %v424
    %1341 = vmatpush.msra.mxu0 %v423
    %1342 = vmatpush.msra.mxu0 %v422
    %1343 = vmatpush.msra.mxu0 %v421
    %1344 = vmatpush.msra.mxu0 %v420
    %1345 = vmatpush.msra.mxu0 %v419
    %1346 = vmatpush.msra.mxu0 %v418
    %1347 = vmatpush.msra.mxu0 %v417
    %1348 = vmatmul.f32.gmra.mxu0 %v1311
    %v1349 = vpop.f32.mrf.mxu0
    %v1350 = vadd.f32 %v1330, %v1349
    %1351 = vdwg.mxu0
    %v1352 = vadd.f32 %v1350, %v547
    %v1353 = vadd.f32 %v1352, %v1352
    %v1354 = vsel %vm400, %v1353, %v1352
    %v1355 = vxor.u32 %v1354, 2147483648
    %v1356 = vmul.f32 %v1355, 1.442695
    %v1357 = vpow.pop %v1356
    %v1358 = vadd.f32 %v1357, 1.0
    %v1359 = vrcp.pop %v1358
    %v1360 = vmul.f32 %v1358, %v1359
    %v1361 = vsub.f32 1.0, %v1360
    %v1362 = vmul.f32 %v1359, %v1361
    %v1363 = vadd.f32 %v1359, %v1362
    %vm1364 = vweird.f32 %v1358
    %vm1365 = vweird.f32 %v1359
    %vm1366 = vmor %vm1364, %vm1365
    %v1367 = vsel %vm1366, %v1359, %v1363
    %v1368 = vand.u32 2147483647, %v1358
    %vm1369 = vcmp.eq.f32.partialorder %v1368, 8.507059e+37
    %v1370 = vand.u32 %v1358, 2147483648
    %v1371 = vor.u32 1.1754944e-38, %v1370
    %v1372 = vsel %vm1369, %v1371, %v1367
    %v1373 = vmul.f32 1.0, %v1372
    %v1374 = vadd.f32 %v1373, %v1373
    %v1375 = vsub.f32 %v1374, 1.0
    %v1376 = vsel %vm400, %v1375, %v1373
    %1377 = vrot.lane.b32.xlu0 %v1376, 96
    %v1378 = vpop.permute.xlu0 %1377
    %1379 = vrot.lane.b32.xlu0 %v1376, 64
    %v1380 = vpop.permute.xlu0 %1379
    %1381 = vrot.lane.b32.xlu0 %v1376, 32
    %v1382 = vpop.permute.xlu0 %1381
    %v1383 = vmul.f32 %v1378, %v1251
    %v1384 = vmul.f32 %v1376, %v1380
    %v1385 = vadd.f32 %v1383, %v1384
    %v1386 = vtanh.pop %v1385
    %v1387 = vmul.f32 %v1382, %v1386
    %1388 = vst [vmem:[#allocation2 + $0x30] sm:$0xff] %v1387
    %v1389 = vld [vmem:[#allocation3 + $0x38] sm:$0xff]
    %1390 = vmatpush.msra.mxu0 %v416
    %1391 = vmatpush.msra.mxu0 %v415
    %1392 = vmatpush.msra.mxu0 %v414
    %1393 = vmatpush.msra.mxu0 %v413
    %1394 = vmatpush.msra.mxu0 %v412
    %1395 = vmatpush.msra.mxu0 %v411
    %1396 = vmatpush.msra.mxu0 %v410
    %1397 = vmatpush.msra.mxu0 %v409
    %1398 = vmatpush.msra.mxu0 %v408
    %1399 = vmatpush.msra.mxu0 %v407
    %1400 = vmatpush.msra.mxu0 %v406
    %1401 = vmatpush.msra.mxu0 %v405
    %1402 = vmatpush.msra.mxu0 %v404
    %1403 = vmatpush.msra.mxu0 %v403
    %1404 = vmatpush.msra.mxu0 %v402
    %1405 = vmatpush.msra.mxu0 %v401
    %1406 = vmatmul.f32.gmra.mxu0 %v1311
    %v1407 = vpop.f32.mrf.mxu0
    %v1408 = vadd.f32 0.0, %v1407
    %1409 = vdwg.mxu0
    %v1410 = vadd.f32 %v1389, %v1408
    %v1411 = vadd.f32 %v1410, %v1410
    %v1412 = vsel %vm400, %v1411, %v1410
    %v1413 = vxor.u32 %v1412, 2147483648
    %v1414 = vmul.f32 %v1413, 1.442695
    %v1415 = vpow.pop %v1414
    %v1416 = vadd.f32 %v1415, 1.0
    %v1417 = vrcp.pop %v1416
    %v1418 = vmul.f32 %v1416, %v1417
    %v1419 = vsub.f32 1.0, %v1418
    %v1420 = vmul.f32 %v1417, %v1419
    %v1421 = vadd.f32 %v1417, %v1420
    %vm1422 = vweird.f32 %v1416
    %vm1423 = vweird.f32 %v1417
    %vm1424 = vmor %vm1422, %vm1423
    %v1425 = vsel %vm1424, %v1417, %v1421
    %v1426 = vand.u32 2147483647, %v1416
    %vm1427 = vcmp.eq.f32.partialorder %v1426, 8.507059e+37
    %v1428 = vand.u32 %v1416, 2147483648
    %v1429 = vor.u32 1.1754944e-38, %v1428
    %v1430 = vsel %vm1427, %v1429, %v1425
    %v1431 = vmul.f32 1.0, %v1430
    %v1432 = vadd.f32 %v1431, %v1431
    %v1433 = vsub.f32 %v1432, 1.0
    %v1434 = vsel %vm400, %v1433, %v1431
    %1435 = vrot.lane.b32.xlu0 %v1434, 96
    %v1436 = vpop.permute.xlu0 %1435
    %1437 = vrot.lane.b32.xlu0 %v1434, 64
    %v1438 = vpop.permute.xlu0 %1437
    %1439 = vrot.lane.b32.xlu0 %v1434, 32
    %v1440 = vpop.permute.xlu0 %1439
    %v1441 = vmul.f32 %v1436, %v1309
    %v1442 = vmul.f32 %v1434, %v1438
    %v1443 = vadd.f32 %v1441, %v1442
    %v1444 = vtanh.pop %v1443
    %v1445 = vmul.f32 %v1440, %v1444
    %1446 = vmatpush.msra.mxu0 %v448
    %1447 = vmatpush.msra.mxu0 %v447
    %1448 = vmatpush.msra.mxu0 %v446
    %1449 = vmatpush.msra.mxu0 %v445
    %1450 = vmatpush.msra.mxu0 %v444
    %1451 = vmatpush.msra.mxu0 %v443
    %1452 = vmatpush.msra.mxu0 %v442
    %1453 = vmatpush.msra.mxu0 %v441
    %1454 = vmatpush.msra.mxu0 %v440
    %1455 = vmatpush.msra.mxu0 %v439
    %1456 = vmatpush.msra.mxu0 %v438
    %1457 = vmatpush.msra.mxu0 %v437
    %1458 = vmatpush.msra.mxu0 %v436
    %1459 = vmatpush.msra.mxu0 %v435
    %1460 = vmatpush.msra.mxu0 %v434
    %1461 = vmatpush.msra.mxu0 %v433
    %1462 = vmatmul.f32.gmra.mxu0 %v1387
    %v1463 = vpop.f32.mrf.mxu0
    %v1464 = vadd.f32 0.0, %v1463
    %1465 = vdwg.mxu0
    %1466 = vmatpush.msra.mxu0 %v432
    %1467 = vmatpush.msra.mxu0 %v431
    %1468 = vmatpush.msra.mxu0 %v430
    %1469 = vmatpush.msra.mxu0 %v429
    %1470 = vmatpush.msra.mxu0 %v428
    %1471 = vmatpush.msra.mxu0 %v427
    %1472 = vmatpush.msra.mxu0 %v426
    %1473 = vmatpush.msra.mxu0 %v425
    %1474 = vmatpush.msra.mxu0 %v424
    %1475 = vmatpush.msra.mxu0 %v423
    %1476 = vmatpush.msra.mxu0 %v422
    %1477 = vmatpush.msra.mxu0 %v421
    %1478 = vmatpush.msra.mxu0 %v420
    %1479 = vmatpush.msra.mxu0 %v419
    %1480 = vmatpush.msra.mxu0 %v418
    %1481 = vmatpush.msra.mxu0 %v417
    %1482 = vmatmul.f32.gmra.mxu0 %v1445
    %v1483 = vpop.f32.mrf.mxu0
    %v1484 = vadd.f32 %v1464, %v1483
    %1485 = vdwg.mxu0
    %v1486 = vadd.f32 %v1484, %v547
    %v1487 = vadd.f32 %v1486, %v1486
    %v1488 = vsel %vm400, %v1487, %v1486
    %v1489 = vxor.u32 %v1488, 2147483648
    %v1490 = vmul.f32 %v1489, 1.442695
    %v1491 = vpow.pop %v1490
    %v1492 = vadd.f32 %v1491, 1.0
    %v1493 = vrcp.pop %v1492
    %v1494 = vmul.f32 %v1492, %v1493
    %v1495 = vsub.f32 1.0, %v1494
    %v1496 = vmul.f32 %v1493, %v1495
    %v1497 = vadd.f32 %v1493, %v1496
    %vm1498 = vweird.f32 %v1492
    %vm1499 = vweird.f32 %v1493
    %vm1500 = vmor %vm1498, %vm1499
    %v1501 = vsel %vm1500, %v1493, %v1497
    %v1502 = vand.u32 2147483647, %v1492
    %vm1503 = vcmp.eq.f32.partialorder %v1502, 8.507059e+37
    %v1504 = vand.u32 %v1492, 2147483648
    %v1505 = vor.u32 1.1754944e-38, %v1504
    %v1506 = vsel %vm1503, %v1505, %v1501
    %v1507 = vmul.f32 1.0, %v1506
    %v1508 = vadd.f32 %v1507, %v1507
    %v1509 = vsub.f32 %v1508, 1.0
    %v1510 = vsel %vm400, %v1509, %v1507
    %1511 = vrot.lane.b32.xlu0 %v1510, 96
    %v1512 = vpop.permute.xlu0 %1511
    %1513 = vrot.lane.b32.xlu0 %v1510, 64
    %v1514 = vpop.permute.xlu0 %1513
    %1515 = vrot.lane.b32.xlu0 %v1510, 32
    %v1516 = vpop.permute.xlu0 %1515
    %v1517 = vmul.f32 %v1512, %v1385
    %v1518 = vmul.f32 %v1510, %v1514
    %v1519 = vadd.f32 %v1517, %v1518
    %v1520 = vtanh.pop %v1519
    %v1521 = vmul.f32 %v1516, %v1520
    %1522 = vst [vmem:[#allocation2 + $0x38] sm:$0xff] %v1521
    %v1523 = vld [vmem:[%s3] sm:$0xff]
    %v1524 = vld [vmem:[%s3 + $0x8] sm:$0xff]
    %v1525 = vld [vmem:[%s3 + $0x10] sm:$0xff]
    %v1526 = vld [vmem:[%s3 + $0x18] sm:$0xff]
    %v1527 = vld [vmem:[%s3 + $0x20] sm:$0xff]
    %v1528 = vld [vmem:[%s3 + $0x28] sm:$0xff]
    %v1529 = vld [vmem:[%s3 + $0x30] sm:$0xff]
    %v1530 = vld [vmem:[%s3 + $0x38] sm:$0xff]
    %v1531 = vld [vmem:[#allocation4 + $0x490] sm:$0xff]
    %v1532 = vld [vmem:[#allocation4 + $0x498] sm:$0xff]
    %v1534 = vsel %vm40, %v1523, 0
    %v1537 = vsel %vm40, %v1524, 0
    %v1540 = vsel %vm40, %v1525, 0
    %v1543 = vsel %vm40, %v1526, 0
    %v1546 = vsel %vm40, %v1527, 0
    %v1549 = vsel %vm40, %v1528, 0
    %v1552 = vsel %vm40, %v1529, 0
    %v1555 = vsel %vm40, %v1530, 0
    %1557 = vmatpush.msra.mxu0 0.0
    %1558 = vmatpush.msra.mxu0 0.0
    %1559 = vmatpush.msra.mxu0 0.0
    %1560 = vmatpush.msra.mxu0 0.0
    %1561 = vmatpush.msra.mxu0 0.0
    %1562 = vmatpush.msra.mxu0 0.0
    %1563 = vmatpush.msra.mxu0 0.0
    %1564 = vmatpush.msra.mxu0 0.0
    %1565 = vmatpush.msra.mxu0 0.0
    %1566 = vmatpush.msra.mxu0 0.0
    %1567 = vmatpush.msra.mxu0 0.0
    %1568 = vmatpush.msra.mxu0 0.0
    %1569 = vmatpush.msra.mxu0 0.0
    %1570 = vmatpush.msra.mxu0 0.0
    %1571 = vmatpush.msra.mxu0 %v1532
    %1572 = vmatpush.msra.mxu0 %v1531
    %1573 = vmatmul.f32.gmra.mxu0 %v1534
    %v1574 = vpop.f32.mrf.mxu0
    %v1575 = vadd.f32 0.0, %v1574
    %1576 = vmatmul.f32.gmra.mxu0 %v1537
    %v1577 = vpop.f32.mrf.mxu0
    %v1578 = vadd.f32 0.0, %v1577
    %1579 = vmatmul.f32.gmra.mxu0 %v1540
    %v1580 = vpop.f32.mrf.mxu0
    %v1581 = vadd.f32 0.0, %v1580
    %1582 = vmatmul.f32.gmra.mxu0 %v1543
    %v1583 = vpop.f32.mrf.mxu0
    %v1584 = vadd.f32 0.0, %v1583
    %1585 = vmatmul.f32.gmra.mxu0 %v1546
    %v1586 = vpop.f32.mrf.mxu0
    %v1587 = vadd.f32 0.0, %v1586
    %1588 = vmatmul.f32.gmra.mxu0 %v1549
    %v1589 = vpop.f32.mrf.mxu0
    %v1590 = vadd.f32 0.0, %v1589
    %1591 = vmatmul.f32.gmra.mxu0 %v1552
    %v1592 = vpop.f32.mrf.mxu0
    %v1593 = vadd.f32 0.0, %v1592
    %1594 = vmatmul.f32.gmra.mxu0 %v1555
    %v1595 = vpop.f32.mrf.mxu0
    %v1596 = vadd.f32 0.0, %v1595
    %1597 = vdwg.mxu0
    %v1598 = vld [vmem:[#allocation2] sm:$0xff]
    %v1599 = vld [vmem:[#allocation2 + $0x8] sm:$0xff]
    %v1600 = vld [vmem:[#allocation2 + $0x10] sm:$0xff]
    %v1601 = vld [vmem:[#allocation2 + $0x18] sm:$0xff]
    %v1602 = vld [vmem:[#allocation2 + $0x20] sm:$0xff]
    %v1603 = vld [vmem:[#allocation2 + $0x28] sm:$0xff]
    %v1604 = vld [vmem:[#allocation2 + $0x30] sm:$0xff]
    %v1605 = vld [vmem:[#allocation2 + $0x38] sm:$0xff]
    %v1606 = vmul.f32 %v1598, %v1575
    %v1607 = vmul.f32 %v1599, %v1578
    %v1608 = vmul.f32 %v1600, %v1581
    %v1609 = vmul.f32 %v1601, %v1584
    %v1610 = vmul.f32 %v1602, %v1587
    %v1611 = vmul.f32 %v1603, %v1590
    %v1612 = vmul.f32 %v1604, %v1593
    %v1613 = vmul.f32 %v1605, %v1596
    %v1614 = vld [vmem:[#allocation4 + $0x380] sm:$0xff]
    %v1615 = vld [vmem:[#allocation4 + $0x388] sm:$0xff]
    %v1616 = vld [vmem:[#allocation4 + $0x390] sm:$0xff]
    %v1617 = vld [vmem:[#allocation4 + $0x398] sm:$0xff]
    %v1618 = vld [vmem:[#allocation4 + $0x3a0] sm:$0xff]
    %v1619 = vld [vmem:[#allocation4 + $0x3a8] sm:$0xff]
    %v1620 = vld [vmem:[#allocation4 + $0x3b0] sm:$0xff]
    %v1621 = vld [vmem:[#allocation4 + $0x3b8] sm:$0xff]
    %v1622 = vld [vmem:[#allocation4 + $0x3c0] sm:$0xff]
    %v1623 = vld [vmem:[#allocation4 + $0x3c8] sm:$0xff]
    %v1624 = vld [vmem:[#allocation4 + $0x3d0] sm:$0xff]
    %v1625 = vld [vmem:[#allocation4 + $0x3d8] sm:$0xff]
    %v1626 = vld [vmem:[#allocation4 + $0x3e0] sm:$0xff]
    %v1627 = vld [vmem:[#allocation4 + $0x3e8] sm:$0xff]
    %v1628 = vld [vmem:[#allocation4 + $0x3f0] sm:$0xff]
    %v1629 = vld [vmem:[#allocation4 + $0x3f8] sm:$0xff]
    %v1630 = vld [vmem:[#allocation4 + $0x4a5] sm:$0x1]
    %v1631 = vperm.slane %v1630, 0
    %1632 = vmatpush.msra.mxu0 %v1629
    %1633 = vmatpush.msra.mxu0 %v1628
    %1634 = vmatpush.msra.mxu0 %v1627
    %1635 = vmatpush.msra.mxu0 %v1626
    %1636 = vmatpush.msra.mxu0 %v1625
    %1637 = vmatpush.msra.mxu0 %v1624
    %1638 = vmatpush.msra.mxu0 %v1623
    %1639 = vmatpush.msra.mxu0 %v1622
    %1640 = vmatpush.msra.mxu0 %v1621
    %1641 = vmatpush.msra.mxu0 %v1620
    %1642 = vmatpush.msra.mxu0 %v1619
    %1643 = vmatpush.msra.mxu0 %v1618
    %1644 = vmatpush.msra.mxu0 %v1617
    %1645 = vmatpush.msra.mxu0 %v1616
    %1646 = vmatpush.msra.mxu0 %v1615
    %1647 = vmatpush.msra.mxu0 %v1614
    %1648 = vmatmul.f32.gmra.mxu0 %v1606
    %v1649 = vpop.f32.mrf.mxu0
    %v1650 = vadd.f32 %v1631, %v1649
    %1651 = vmatmul.f32.gmra.mxu0 %v1607
    %v1652 = vpop.f32.mrf.mxu0
    %v1653 = vadd.f32 %v1631, %v1652
    %1654 = vmatmul.f32.gmra.mxu0 %v1608
    %v1655 = vpop.f32.mrf.mxu0
    %v1656 = vadd.f32 %v1631, %v1655
    %1657 = vmatmul.f32.gmra.mxu0 %v1609
    %v1658 = vpop.f32.mrf.mxu0
    %v1659 = vadd.f32 %v1631, %v1658
    %1660 = vmatmul.f32.gmra.mxu0 %v1610
    %v1661 = vpop.f32.mrf.mxu0
    %v1662 = vadd.f32 %v1631, %v1661
    %1663 = vmatmul.f32.gmra.mxu0 %v1611
    %v1664 = vpop.f32.mrf.mxu0
    %v1665 = vadd.f32 %v1631, %v1664
    %1666 = vmatmul.f32.gmra.mxu0 %v1612
    %v1667 = vpop.f32.mrf.mxu0
    %v1668 = vadd.f32 %v1631, %v1667
    %1669 = vmatmul.f32.gmra.mxu0 %v1613
    %v1670 = vpop.f32.mrf.mxu0
    %v1671 = vadd.f32 %v1631, %v1670
    %1672 = vdwg.mxu0
    %v1673 = vmax.f32 %v1650, 0.0
    %v1674 = vmax.f32 %v1653, 0.0
    %v1675 = vmax.f32 %v1656, 0.0
    %v1676 = vmax.f32 %v1659, 0.0
    %v1677 = vmax.f32 %v1662, 0.0
    %v1678 = vmax.f32 %v1665, 0.0
    %v1679 = vmax.f32 %v1668, 0.0
    %v1680 = vmax.f32 %v1671, 0.0
    %v1681 = vld [vmem:[#allocation4 + $0x400] sm:$0xff]
    %v1682 = vld [vmem:[#allocation4 + $0x408] sm:$0xff]
    %v1683 = vld [vmem:[#allocation4 + $0x410] sm:$0xff]
    %v1684 = vld [vmem:[#allocation4 + $0x418] sm:$0xff]
    %v1685 = vld [vmem:[#allocation4 + $0x420] sm:$0xff]
    %v1686 = vld [vmem:[#allocation4 + $0x428] sm:$0xff]
    %v1687 = vld [vmem:[#allocation4 + $0x430] sm:$0xff]
    %v1688 = vld [vmem:[#allocation4 + $0x438] sm:$0xff]
    %v1689 = vld [vmem:[#allocation4 + $0x440] sm:$0xff]
    %v1690 = vld [vmem:[#allocation4 + $0x448] sm:$0xff]
    %v1691 = vld [vmem:[#allocation4 + $0x450] sm:$0xff]
    %v1692 = vld [vmem:[#allocation4 + $0x458] sm:$0xff]
    %v1693 = vld [vmem:[#allocation4 + $0x460] sm:$0xff]
    %v1694 = vld [vmem:[#allocation4 + $0x468] sm:$0xff]
    %v1695 = vld [vmem:[#allocation4 + $0x470] sm:$0xff]
    %v1696 = vld [vmem:[#allocation4 + $0x478] sm:$0xff]
    %v1697 = vld [vmem:[#allocation4 + $0x4a6] sm:$0x1]
    %v1698 = vperm.slane %v1697, 0
    %1699 = vmatpush.msra.mxu0 %v1696
    %1700 = vmatpush.msra.mxu0 %v1695
    %1701 = vmatpush.msra.mxu0 %v1694
    %1702 = vmatpush.msra.mxu0 %v1693
    %1703 = vmatpush.msra.mxu0 %v1692
    %1704 = vmatpush.msra.mxu0 %v1691
    %1705 = vmatpush.msra.mxu0 %v1690
    %1706 = vmatpush.msra.mxu0 %v1689
    %1707 = vmatpush.msra.mxu0 %v1688
    %1708 = vmatpush.msra.mxu0 %v1687
    %1709 = vmatpush.msra.mxu0 %v1686
    %1710 = vmatpush.msra.mxu0 %v1685
    %1711 = vmatpush.msra.mxu0 %v1684
    %1712 = vmatpush.msra.mxu0 %v1683
    %1713 = vmatpush.msra.mxu0 %v1682
    %1714 = vmatpush.msra.mxu0 %v1681
    %1715 = vmatmul.f32.gmra.mxu0 %v1673
    %v1716 = vpop.f32.mrf.mxu0
    %v1717 = vadd.f32 %v1698, %v1716
    %1718 = vmatmul.f32.gmra.mxu0 %v1674
    %v1719 = vpop.f32.mrf.mxu0
    %v1720 = vadd.f32 %v1698, %v1719
    %1721 = vmatmul.f32.gmra.mxu0 %v1675
    %v1722 = vpop.f32.mrf.mxu0
    %v1723 = vadd.f32 %v1698, %v1722
    %1724 = vmatmul.f32.gmra.mxu0 %v1676
    %v1725 = vpop.f32.mrf.mxu0
    %v1726 = vadd.f32 %v1698, %v1725
    %1727 = vmatmul.f32.gmra.mxu0 %v1677
    %v1728 = vpop.f32.mrf.mxu0
    %v1729 = vadd.f32 %v1698, %v1728
    %1730 = vmatmul.f32.gmra.mxu0 %v1678
    %v1731 = vpop.f32.mrf.mxu0
    %v1732 = vadd.f32 %v1698, %v1731
    %1733 = vmatmul.f32.gmra.mxu0 %v1679
    %v1734 = vpop.f32.mrf.mxu0
    %v1735 = vadd.f32 %v1698, %v1734
    %1736 = vmatmul.f32.gmra.mxu0 %v1680
    %v1737 = vpop.f32.mrf.mxu0
    %v1738 = vadd.f32 %v1698, %v1737
    %1739 = vdwg.mxu0
    %1740 = vst [vmem:[%s5] sm:$0xff] %v1717
    %1741 = vst [vmem:[%s5 + $0x8] sm:$0xff] %v1720
    %1742 = vst [vmem:[%s5 + $0x10] sm:$0xff] %v1723
    %1743 = vst [vmem:[%s5 + $0x18] sm:$0xff] %v1726
    %1744 = vst [vmem:[%s5 + $0x20] sm:$0xff] %v1729
    %1745 = vst [vmem:[%s5 + $0x28] sm:$0xff] %v1732
    %1746 = vst [vmem:[%s5 + $0x30] sm:$0xff] %v1735
    %1747 = vst [vmem:[%s5 + $0x38] sm:$0xff] %v1738
    // Predicated region
    $region26: #{gcn_lstm_forward.1} parent=1 // pred_check
      _
    $region27: #{gcn_lstm_forward.1} parent=1 // pred_check_branch
      %1749 = sbr.rel (0) target = $region29
    $region28: #{gcn_lstm_forward.1} parent=1 // pred_region
      _
    $region29: #{gcn_lstm_forward.1} parent=1 // pred_fallthru
      _
    // Predicated region
    $region30: #{gcn_lstm_forward.1} parent=1 // pred_check
      _
    $region31: #{gcn_lstm_forward.1} parent=1 // pred_check_branch
      %1751 = sbr.rel (0) target = $region33
    $region32: #{gcn_lstm_forward.1} parent=1 // pred_region
      _
    $region33: #{gcn_lstm_forward.1} parent=1 // pred_fallthru
      _
    %1752 = vsyncpa [#allocation5], 1

</llo_original>
